<compile_context>
chip_gen: v6e
topology: v6e:2x2x1
jax: 0.10.0
libtpu: 0.0.40
codegen_flags: <defaults>
</compile_context>

<pallas_src>
import jax
import jax.numpy as jnp
from jax.experimental import pallas as pl
from jax.experimental.pallas import tpu as pltpu

# ---------------- model configuration (small, consistent with the module) ----
HIDDEN = 32          # stands in for n_feats = 768
HEADS = 4
HEAD_DIM = HIDDEN // HEADS
INTERMEDIATE = 64
LAYERS = 2           # encoder layers per BERT stack
SEQ = 8
BATCH = 2
VOCAB = 50
MAX_POS = 16
TYPE_VOCAB = 2
NUM_CLASSES = 3      # config['num_classes']
N = 2                # config['number']  (classifier input = HIDDEN * N)
NUM_STACKS = 2       # ep1 and ep3
LN_EPS = 1e-12
DTYPE = jnp.float32
MXU_DTYPE = jnp.bfloat16       # matmul operand dtype; accumulation stays f32
ATTN_SCALE = HEAD_DIM ** -0.5  # python float -> folded into q
CLS_PAD = 128                  # lane-dense classifier output width
VEC_WIDTH = 128                # lane-dense per-layer vector-slab width

# rows of the packed per-layer vector slab (one (8, 128) vreg tile per layer)
(ROW_QKV_B, ROW_O_B, ROW_LN1_G, ROW_LN1_B,
 ROW_I_B, ROW_F_B, ROW_LN2_G, ROW_LN2_B) = range(8)


# ----------------------------- in-kernel helpers ------------------------------
def _mm(x, w):
    """MXU matmul: bf16 operands (weights already bf16), f32 accumulation."""
    return jnp.dot(x.astype(MXU_DTYPE), w.astype(MXU_DTYPE),
                   preferred_element_type=jnp.float32)


def _ln(x, g, b):
    """LayerNorm over the last dim, stats in f32."""
    mu = jnp.mean(x, axis=-1, keepdims=True)
    xc = x - mu
    var = jnp.mean(xc * xc, axis=-1, keepdims=True)
    return xc * jax.lax.rsqrt(var + LN_EPS) * g + b


def _gelu(x):
    # TODO(synk): HF BERT uses erf-GELU; tanh approximation used in-kernel.
    return 0.5 * x * (1.0 + jnp.tanh(0.7978845608028654 * (x + 0.044715 * x * x * x)))


def _attention(qkv, mask):
    """Self-attention.  qkv: (B*S, 3H) f32, mask: (B, S) additive -> (B*S, H)."""
    q = (qkv[:, 0:HIDDEN] * ATTN_SCALE).reshape(BATCH, SEQ, HIDDEN)
    k = qkv[:, HIDDEN:2 * HIDDEN].reshape(BATCH, SEQ, HIDDEN)
    v = qkv[:, 2 * HIDDEN:3 * HIDDEN].reshape(BATCH, SEQ, HIDDEN)
    mask3 = mask[:, None, :]                                    # (B, 1, S) keys axis
    head_ctx = []
    # Batch handled by one batched dot_general per head; heads stay a short
    # static loop (head_dim=8 stand-in; at real head_dim=64 two heads pack per
    # 128-lane MXU pass).
    for h in range(HEADS):
        c0 = h * HEAD_DIM
        qh = q[:, :, c0:c0 + HEAD_DIM].astype(MXU_DTYPE)        # (B, S, D)
        kh = k[:, :, c0:c0 + HEAD_DIM].astype(MXU_DTYPE)
        vh = v[:, :, c0:c0 + HEAD_DIM].astype(MXU_DTYPE)
        s = jnp.einsum('bqd,bkd->bqk', qh, kh,
                       preferred_element_type=jnp.float32)      # (B, S, S)
        s = s + mask3
        s = s - jnp.max(s, axis=-1, keepdims=True)
        p = jnp.exp(s)
        # EUP approx reciprocal instead of a VALU divide.
        p = p * pl.reciprocal(jnp.sum(p, axis=-1, keepdims=True), approx=True)
        head_ctx.append(jnp.einsum('bqk,bkd->bqd', p.astype(MXU_DTYPE), vh,
                                   preferred_element_type=jnp.float32))
    ctx = jnp.concatenate(head_ctx, axis=-1)                    # (B, S, H) lane-dense
    return ctx.reshape(BATCH * SEQ, HIDDEN)


# ----------------------------- fused nBert kernel -----------------------------
def _nbert_kernel(emb_ref, mask_ref, emb_ln_ref,
                  qkv_w_ref, o_w_ref, i_w_ref, f_w_ref, vec_ref,
                  pool_w_ref, pool_b_ref, cls_w_ref, cls_b_ref,
                  out_ref, x_ref, pooled_ref):
    """Grid = (stack, layer).  One grid step = one encoder layer of one stack;
    the residual stream lives in x_ref (VMEM) across the layer axis, pooled CLS
    features live in pooled_ref across the stack axis, and the classifier runs
    in the very last grid step."""
    stack = pl.program_id(0)
    layer = pl.program_id(1)

    # ---- stack prologue: shared embedding LayerNorm into the residual carry --
    @pl.when(layer == 0)
    def _():
        eln = emb_ln_ref[...]                                   # (2, H): [gamma; beta]
        x_ref[...] = _ln(emb_ref[...], eln[0:1, :], eln[1:2, :])

    x = x_ref[...]                                              # (B*S, H) f32
    mask = mask_ref[...]                                        # (B, S) additive

    # packed per-layer 1-row vectors: one (8, 128) tile, sliced in-register
    vec = vec_ref[0, 0]
    qkv_b = vec[ROW_QKV_B:ROW_QKV_B + 1, 0:3 * HIDDEN]
    o_b   = vec[ROW_O_B:ROW_O_B + 1, 0:HIDDEN]
    ln1_g = vec[ROW_LN1_G:ROW_LN1_G + 1, 0:HIDDEN]
    ln1_b = vec[ROW_LN1_B:ROW_LN1_B + 1, 0:HIDDEN]
    i_b   = vec[ROW_I_B:ROW_I_B + 1, 0:INTERMEDIATE]
    f_b   = vec[ROW_F_B:ROW_F_B + 1, 0:HIDDEN]
    ln2_g = vec[ROW_LN2_G:ROW_LN2_G + 1, 0:HIDDEN]
    ln2_b = vec[ROW_LN2_B:ROW_LN2_B + 1, 0:HIDDEN]

    # ---- one encoder layer, fully resident in VMEM ----
    qkv = _mm(x, qkv_w_ref[0, 0]) + qkv_b                       # fused QKV (B*S, 3H)
    ctx = _attention(qkv, mask)
    attn_out = _mm(ctx, o_w_ref[0, 0]) + o_b
    x = _ln(attn_out + x, ln1_g, ln1_b)
    inter = _gelu(_mm(x, i_w_ref[0, 0]) + i_b)
    ffn = _mm(inter, f_w_ref[0, 0]) + f_b
    x = _ln(ffn + x, ln2_g, ln2_b)
    x_ref[...] = x

    # ---- stack epilogue: pooler (CLS + dense + tanh) ----
    @pl.when(layer == LAYERS - 1)
    def _():
        # CLS rows (token 0 of each batch element) via one sublane-strided read.
        cls = x_ref[pl.ds(0, BATCH, stride=SEQ), :]             # (B, H)
        pooled_ref[stack] = jnp.tanh(_mm(cls, pool_w_ref[0]) + pool_b_ref[0])

        # ---- classifier fused into the very last grid step ----
        @pl.when(stack == NUM_STACKS - 1)
        def _():
            # feat_all = concat([feat2 (ep3), feat1 (ep1)], dim=1); Dropout = id.
            feat = jnp.concatenate([pooled_ref[1], pooled_ref[0]], axis=-1)  # (B, 2H)
            y = _mm(feat, cls_w_ref[...]) + cls_b_ref[...]       # (B, CLS_PAD)
            out_ref[...] = y.astype(out_ref.dtype)


# ----------------------------- BlockSpec helpers ------------------------------
def _shared(shape):
    n = len(shape)
    return pl.BlockSpec(tuple(shape), lambda s, l: (0,) * n)


def _per_stack(shape):
    n = len(shape)
    return pl.BlockSpec((1,) + tuple(shape[1:]), lambda s, l: (s,) + (0,) * (n - 1))


def _per_layer(shape):
    n = len(shape)
    return pl.BlockSpec((1, 1) + tuple(shape[2:]),
                        lambda s, l: (s, l) + (0,) * (n - 2))


def nbert_fused(emb2d, ext_mask, params):
    in_specs = [
        _shared(emb2d.shape),                  # embeddings (B*S, H), DMA'd once
        _shared(ext_mask.shape),               # additive mask (B, S)
        _shared(params["emb_ln"].shape),       # (2, H) packed gamma/beta
        _per_layer(params["qkv_w"].shape),     # per-layer weight blocks (bf16)
        _per_layer(params["o_w"].shape),
        _per_layer(params["i_w"].shape),
        _per_layer(params["f_w"].shape),
        _per_layer(params["vec"].shape),       # packed per-layer vectors (8, 128)
        _per_stack(params["pool_w"].shape),
        _per_stack(params["pool_b"].shape),
        _shared(params["cls_w"].shape),
        _shared(params["cls_b"].shape),
    ]
    return pl.pallas_call(
        _nbert_kernel,
        grid=(NUM_STACKS, LAYERS),
        in_specs=in_specs,
        out_specs=pl.BlockSpec((BATCH, CLS_PAD), lambda s, l: (0, 0)),
        out_shape=jax.ShapeDtypeStruct((BATCH, CLS_PAD), DTYPE),
        scratch_shapes=[
            pltpu.VMEM((BATCH * SEQ, HIDDEN), jnp.float32),        # residual carry
            pltpu.VMEM((NUM_STACKS, BATCH, HIDDEN), jnp.float32),  # pooled features
        ],
        compiler_params=pltpu.CompilerParams(
            # Both axes carry VMEM state (x across layers, pooled/classifier
            # across stacks) -> serial loop on one TC.
            # TODO(synk): on v7x, un-fuse the classifier and mark the stack
            # axis pltpu.CORE_PARALLEL to shard ep1/ep3 across both TCs.
            dimension_semantics=("arbitrary", "arbitrary"),
            vmem_limit_bytes=32 * 1024 * 1024,
        ),
    )(emb2d, ext_mask, params["emb_ln"],
      params["qkv_w"], params["o_w"], params["i_w"], params["f_w"], params["vec"],
      params["pool_w"], params["pool_b"], params["cls_w"], params["cls_b"])


# ----------------------------- parameter init --------------------------------
def init_params(key):
    keys = iter(jax.random.split(key, 32))

    def w(shape, dtype=MXU_DTYPE, std=0.02):
        return (jax.random.normal(next(keys), shape, jnp.float32) * std).astype(dtype)

    S2, L = NUM_STACKS, LAYERS

    # pack the eight per-layer 1-row vectors into one lane-dense slab
    def pack_rows(rows):
        slab = jnp.zeros((S2, L, 8, VEC_WIDTH), DTYPE)
        for r, v in rows:
            slab = slab.at[:, :, r, :v.shape[-1]].set(v)
        return slab

    vec = pack_rows([
        (ROW_QKV_B, jnp.zeros((S2, L, 3 * HIDDEN), DTYPE)),
        (ROW_O_B,   jnp.zeros((S2, L, HIDDEN), DTYPE)),
        (ROW_LN1_G, jnp.ones((S2, L, HIDDEN), DTYPE)),
        (ROW_LN1_B, jnp.zeros((S2, L, HIDDEN), DTYPE)),
        (ROW_I_B,   jnp.zeros((S2, L, INTERMEDIATE), DTYPE)),
        (ROW_F_B,   jnp.zeros((S2, L, HIDDEN), DTYPE)),
        (ROW_LN2_G, jnp.ones((S2, L, HIDDEN), DTYPE)),
        (ROW_LN2_B, jnp.zeros((S2, L, HIDDEN), DTYPE)),
    ])

    # classifier weight padded to a lane-dense 128-wide output (zeros beyond C)
    cls_w = jnp.zeros((HIDDEN * N, CLS_PAD), jnp.float32)
    cls_w = cls_w.at[:, :NUM_CLASSES].set(
        jax.random.normal(next(keys), (HIDDEN * N, NUM_CLASSES), jnp.float32) * 0.02)

    return dict(
        # shared BERT embeddings (from `bert`, used by both encoders) - f32
        word_emb=w((VOCAB, HIDDEN), dtype=DTYPE),
        pos_emb=w((MAX_POS, HIDDEN), dtype=DTYPE),
        type_emb=w((TYPE_VOCAB, HIDDEN), dtype=DTYPE),
        emb_ln=jnp.concatenate([jnp.ones((1, HIDDEN), DTYPE),
                                jnp.zeros((1, HIDDEN), DTYPE)], axis=0),
        # per-stack (ep1 = index 0, ep3 = index 1) per-layer matmul weights, bf16
        qkv_w=w((S2, L, HIDDEN, 3 * HIDDEN)),
        o_w=w((S2, L, HIDDEN, HIDDEN)),
        i_w=w((S2, L, HIDDEN, INTERMEDIATE)),
        f_w=w((S2, L, INTERMEDIATE, HIDDEN)),
        vec=vec,                                   # packed biases / LN params, f32
        pool_w=w((S2, HIDDEN, HIDDEN)),
        pool_b=jnp.zeros((S2, 1, HIDDEN), DTYPE),
        # classifier
        cls_w=cls_w.astype(MXU_DTYPE),
        cls_b=jnp.zeros((1, CLS_PAD), DTYPE),
    )


# ----------------------------- model forward ---------------------------------
def nbert_forward(params, input_ids, token_type_ids=None, attention_mask=None):
    if attention_mask is None:
        attention_mask = jnp.ones_like(input_ids)
    if token_type_ids is None:
        token_type_ids = jnp.zeros_like(input_ids)
    # extended_attention_mask = (1 - mask) * -10000  (additive, per batch row)
    ext_mask = (1.0 - attention_mask.astype(DTYPE)) * -10000.0        # (B, S)

    # Embedding gathers are glue (plain JAX); everything after is one Pallas call.
    pos_ids = jnp.arange(SEQ, dtype=jnp.int32)[None, :]
    emb = (params["word_emb"][input_ids]
           + params["pos_emb"][pos_ids]
           + params["type_emb"][token_type_ids])                      # (B, S, H)
    emb2d = emb.reshape(BATCH * SEQ, HIDDEN)

    preds_padded = nbert_fused(emb2d, ext_mask, params)               # (B, 128)
    return preds_padded[:, :NUM_CLASSES]                              # (B, C)


# ----------------------------------- main -------------------------------------
if __name__ == "__main__":
    root = jax.random.PRNGKey(0)
    k_param, k_ids = jax.random.split(root)

    params = init_params(k_param)
    input_ids = jax.random.randint(k_ids, (BATCH, SEQ), 0, VOCAB, dtype=jnp.int32)

    preds = jax.jit(nbert_forward)(params, input_ids)
    preds = jax.block_until_ready(preds)

    assert preds.shape == (BATCH, NUM_CLASSES)
    assert bool(jnp.all(jnp.isfinite(preds)))
    print("KERNEL_OK")
</pallas_src>

<mosaic_0001>
module attributes {stable_mosaic.version = 11 : i64} {
  func.func @_nbert_kernel(%arg0: i32, %arg1: i32, %arg2: memref<16x32xf32, #tpu.memory_space<vmem>>, %arg3: memref<2x8xf32, #tpu.memory_space<vmem>>, %arg4: memref<2x32xf32, #tpu.memory_space<vmem>>, %arg5: memref<1x1x32x96xbf16, #tpu.memory_space<vmem>>, %arg6: memref<1x1x32x32xbf16, #tpu.memory_space<vmem>>, %arg7: memref<1x1x32x64xbf16, #tpu.memory_space<vmem>>, %arg8: memref<1x1x64x32xbf16, #tpu.memory_space<vmem>>, %arg9: memref<1x1x8x128xf32, #tpu.memory_space<vmem>>, %arg10: memref<1x32x32xbf16, #tpu.memory_space<vmem>>, %arg11: memref<1x1x32xf32, #tpu.memory_space<vmem>>, %arg12: memref<64x128xbf16, #tpu.memory_space<vmem>>, %arg13: memref<1x128xf32, #tpu.memory_space<vmem>>, %arg14: memref<2x128xf32, #tpu.memory_space<vmem>>, %arg15: memref<16x32xf32, #tpu.memory_space<vmem>>, %arg16: memref<2x2x32xf32, #tpu.memory_space<vmem>>) attributes {dimension_semantics = [#tpu.dimension_semantics<arbitrary>, #tpu.dimension_semantics<arbitrary>], iteration_bounds = array<i64: 2, 2>, scalar_prefetch = 0 : i64, scratch_operands = 2 : i64, tpu.core_type = #tpu.core_type<tc>, window_params = [{pipeline_mode = #tpu.pipeline_mode<synchronous>, transform_indices = @transform_0, window_bounds = array<i64: 16, 32>}, {pipeline_mode = #tpu.pipeline_mode<synchronous>, transform_indices = @transform_1, window_bounds = array<i64: 2, 8>}, {pipeline_mode = #tpu.pipeline_mode<synchronous>, transform_indices = @transform_2, window_bounds = array<i64: 2, 32>}, {transform_indices = @transform_3, window_bounds = array<i64: 1, 1, 32, 96>}, {transform_indices = @transform_4, window_bounds = array<i64: 1, 1, 32, 32>}, {transform_indices = @transform_5, window_bounds = array<i64: 1, 1, 32, 64>}, {transform_indices = @transform_6, window_bounds = array<i64: 1, 1, 64, 32>}, {transform_indices = @transform_7, window_bounds = array<i64: 1, 1, 8, 128>}, {transform_indices = @transform_8, window_bounds = array<i64: 1, 32, 32>}, {transform_indices = @transform_9, window_bounds = array<i64: 1, 1, 32>}, {pipeline_mode = #tpu.pipeline_mode<synchronous>, transform_indices = @transform_10, window_bounds = array<i64: 64, 128>}, {pipeline_mode = #tpu.pipeline_mode<synchronous>, transform_indices = @transform_11, window_bounds = array<i64: 1, 128>}, {pipeline_mode = #tpu.pipeline_mode<synchronous>, transform_indices = @transform_12, window_bounds = array<i64: 2, 128>}]} {
    %c0_i32 = arith.constant 0 : i32
    %0 = arith.cmpi eq, %arg1, %c0_i32 : i32
    %1 = arith.extui %0 : i1 to i32
    %c0_i32_0 = arith.constant 0 : i32
    %2 = arith.cmpi ne, %1, %c0_i32_0 : i32
    scf.if %2 {
      %c0_61 = arith.constant 0 : index
      %c0_62 = arith.constant 0 : index
      %193 = vector.load %arg4[%c0_61, %c0_62] : memref<2x32xf32, #tpu.memory_space<vmem>>, vector<2x32xf32>
      %c0_63 = arith.constant 0 : index
      %c0_64 = arith.constant 0 : index
      %194 = vector.load %arg2[%c0_63, %c0_64] : memref<16x32xf32, #tpu.memory_space<vmem>>, vector<16x32xf32>
      %195 = vector.extract_strided_slice %193 {offsets = [0, 0], sizes = [1, 32], strides = [1, 1]} : vector<2x32xf32> to vector<1x32xf32>
      %196 = vector.extract_strided_slice %193 {offsets = [1, 0], sizes = [1, 32], strides = [1, 1]} : vector<2x32xf32> to vector<1x32xf32>
      %cst_65 = arith.constant dense<0.000000e+00> : vector<16xf32>
      %197 = vector.multi_reduction <add>, %194, %cst_65 [1] : vector<16x32xf32> to vector<16xf32>
      %198 = vector.shape_cast %197 : vector<16xf32> to vector<16x1xf32>
      %cst_66 = arith.constant 3.200000e+01 : f32
      %199 = vector.broadcast %cst_66 : f32 to vector<16x1xf32>
      %200 = arith.divf %198, %199 : vector<16x1xf32>
      %201 = vector.broadcast %200 : vector<16x1xf32> to vector<16x32xf32>
      %202 = arith.subf %194, %201 : vector<16x32xf32>
      %203 = arith.mulf %202, %202 : vector<16x32xf32>
      %cst_67 = arith.constant dense<0.000000e+00> : vector<16xf32>
      %204 = vector.multi_reduction <add>, %203, %cst_67 [1] : vector<16x32xf32> to vector<16xf32>
      %205 = vector.shape_cast %204 : vector<16xf32> to vector<16x1xf32>
      %cst_68 = arith.constant 3.200000e+01 : f32
      %206 = vector.broadcast %cst_68 : f32 to vector<16x1xf32>
      %207 = arith.divf %205, %206 : vector<16x1xf32>
      %cst_69 = arith.constant 9.99999996E-13 : f32
      %208 = vector.broadcast %cst_69 : f32 to vector<16x1xf32>
      %209 = arith.addf %207, %208 : vector<16x1xf32>
      %210 = math.rsqrt %209 : vector<16x1xf32>
      %211 = vector.broadcast %210 : vector<16x1xf32> to vector<16x32xf32>
      %212 = arith.mulf %202, %211 : vector<16x32xf32>
      %213 = vector.broadcast %195 : vector<1x32xf32> to vector<16x32xf32>
      %214 = arith.mulf %212, %213 : vector<16x32xf32>
      %215 = vector.broadcast %196 : vector<1x32xf32> to vector<16x32xf32>
      %216 = arith.addf %214, %215 : vector<16x32xf32>
      %c0_70 = arith.constant 0 : index
      %c0_71 = arith.constant 0 : index
      %217 = vector.load %arg15[%c0_70, %c0_71] : memref<16x32xf32, #tpu.memory_space<vmem>>, vector<16x32xf32>
      tpu.vector_store %arg15[%c0_70, %c0_71], %216 {strides = array<i32>} : memref<16x32xf32, #tpu.memory_space<vmem>>, vector<16x32xf32>,
    } else {
    }
    %c0 = arith.constant 0 : index
    %c0_1 = arith.constant 0 : index
    %3 = vector.load %arg15[%c0, %c0_1] : memref<16x32xf32, #tpu.memory_space<vmem>>, vector<16x32xf32>
    %c0_2 = arith.constant 0 : index
    %c0_3 = arith.constant 0 : index
    %4 = vector.load %arg3[%c0_2, %c0_3] : memref<2x8xf32, #tpu.memory_space<vmem>>, vector<2x8xf32>
    %c0_4 = arith.constant 0 : index
    %c0_5 = arith.constant 0 : index
    %c0_6 = arith.constant 0 : index
    %c0_7 = arith.constant 0 : index
    %5 = vector.load %arg9[%c0_4, %c0_5, %c0_6, %c0_7] : memref<1x1x8x128xf32, #tpu.memory_space<vmem>>, vector<1x1x8x128xf32>
    %6 = vector.shape_cast %5 : vector<1x1x8x128xf32> to vector<8x128xf32>
    %7 = vector.extract_strided_slice %6 {offsets = [0, 0], sizes = [1, 96], strides = [1, 1]} : vector<8x128xf32> to vector<1x96xf32>
    %8 = vector.extract_strided_slice %6 {offsets = [1, 0], sizes = [1, 32], strides = [1, 1]} : vector<8x128xf32> to vector<1x32xf32>
    %9 = vector.extract_strided_slice %6 {offsets = [2, 0], sizes = [1, 32], strides = [1, 1]} : vector<8x128xf32> to vector<1x32xf32>
    %10 = vector.extract_strided_slice %6 {offsets = [3, 0], sizes = [1, 32], strides = [1, 1]} : vector<8x128xf32> to vector<1x32xf32>
    %11 = vector.extract_strided_slice %6 {offsets = [4, 0], sizes = [1, 64], strides = [1, 1]} : vector<8x128xf32> to vector<1x64xf32>
    %12 = vector.extract_strided_slice %6 {offsets = [5, 0], sizes = [1, 32], strides = [1, 1]} : vector<8x128xf32> to vector<1x32xf32>
    %13 = vector.extract_strided_slice %6 {offsets = [6, 0], sizes = [1, 32], strides = [1, 1]} : vector<8x128xf32> to vector<1x32xf32>
    %14 = vector.extract_strided_slice %6 {offsets = [7, 0], sizes = [1, 32], strides = [1, 1]} : vector<8x128xf32> to vector<1x32xf32>
    %c0_8 = arith.constant 0 : index
    %c0_9 = arith.constant 0 : index
    %c0_10 = arith.constant 0 : index
    %c0_11 = arith.constant 0 : index
    %15 = vector.load %arg5[%c0_8, %c0_9, %c0_10, %c0_11] : memref<1x1x32x96xbf16, #tpu.memory_space<vmem>>, vector<1x1x32x96xbf16>
    %16 = vector.shape_cast %15 : vector<1x1x32x96xbf16> to vector<32x96xbf16>
    %17 = arith.truncf %3 : vector<16x32xf32> to vector<16x32xbf16>
    %cst = arith.constant dense<0.000000e+00> : vector<16x96xf32>
    %18 = tpu.matmul %17, %16, %cst {dimension_numbers = #tpu.dot_dimension_numbers<[1], [0], [0], [1], [0, 0, 1, 1], [], []>} : vector<16x32xbf16>, vector<32x96xbf16>, vector<16x96xf32> -> vector<16x96xf32>
    %19 = vector.broadcast %7 : vector<1x96xf32> to vector<16x96xf32>
    %20 = arith.addf %18, %19 : vector<16x96xf32>
    %21 = vector.extract_strided_slice %20 {offsets = [0, 0], sizes = [16, 32], strides = [1, 1]} : vector<16x96xf32> to vector<16x32xf32>
    %cst_12 = arith.constant 0.353553385 : f32
    %22 = vector.broadcast %cst_12 : f32 to vector<16x32xf32>
    %23 = arith.mulf %21, %22 : vector<16x32xf32>
    %24 = vector.shape_cast %23 : vector<16x32xf32> to vector<2x8x32xf32>
    %25 = vector.extract_strided_slice %20 {offsets = [0, 32], sizes = [16, 32], strides = [1, 1]} : vector<16x96xf32> to vector<16x32xf32>
    %26 = vector.shape_cast %25 : vector<16x32xf32> to vector<2x8x32xf32>
    %27 = vector.extract_strided_slice %20 {offsets = [0, 64], sizes = [16, 32], strides = [1, 1]} : vector<16x96xf32> to vector<16x32xf32>
    %28 = vector.shape_cast %27 : vector<16x32xf32> to vector<2x8x32xf32>
    %29 = vector.shape_cast %4 : vector<2x8xf32> to vector<2x1x8xf32>
    %30 = vector.extract_strided_slice %24 {offsets = [0, 0, 0], sizes = [2, 8, 8], strides = [1, 1, 1]} : vector<2x8x32xf32> to vector<2x8x8xf32>
    %31 = arith.truncf %30 : vector<2x8x8xf32> to vector<2x8x8xbf16>
    %32 = vector.extract_strided_slice %26 {offsets = [0, 0, 0], sizes = [2, 8, 8], strides = [1, 1, 1]} : vector<2x8x32xf32> to vector<2x8x8xf32>
    %33 = arith.truncf %32 : vector<2x8x8xf32> to vector<2x8x8xbf16>
    %34 = vector.extract_strided_slice %28 {offsets = [0, 0, 0], sizes = [2, 8, 8], strides = [1, 1, 1]} : vector<2x8x32xf32> to vector<2x8x8xf32>
    %35 = arith.truncf %34 : vector<2x8x8xf32> to vector<2x8x8xbf16>
    "tpu.trace_start"() <{level = 10 : i32, message = "bqd,bkd->bqk"}> : () -> ()
    %cst_13 = arith.constant dense<0.000000e+00> : vector<2x8x8xf32>
    %36 = tpu.matmul %31, %33, %cst_13 {dimension_numbers = #tpu.dot_dimension_numbers<[2], [2], [1], [1], [0, 0, 0, 1, 1, 1], [0], [0]>} : vector<2x8x8xbf16>, vector<2x8x8xbf16>, vector<2x8x8xf32> -> vector<2x8x8xf32>
    "tpu.trace_stop"() : () -> ()
    %37 = vector.broadcast %29 : vector<2x1x8xf32> to vector<2x8x8xf32>
    %38 = arith.addf %36, %37 : vector<2x8x8xf32>
    %cst_14 = arith.constant dense<0xFF800000> : vector<2x8xf32>
    %39 = vector.multi_reduction <maximumf>, %38, %cst_14 [2] : vector<2x8x8xf32> to vector<2x8xf32>
    %40 = vector.shape_cast %39 : vector<2x8xf32> to vector<2x8x1xf32>
    %41 = vector.broadcast %40 : vector<2x8x1xf32> to vector<2x8x8xf32>
    %42 = arith.subf %38, %41 : vector<2x8x8xf32>
    %43 = math.exp %42 : vector<2x8x8xf32>
    %cst_15 = arith.constant dense<0.000000e+00> : vector<2x8xf32>
    %44 = vector.multi_reduction <add>, %43, %cst_15 [2] : vector<2x8x8xf32> to vector<2x8xf32>
    %45 = vector.shape_cast %44 : vector<2x8xf32> to vector<2x8x1xf32>
    %46 = tpu.reciprocal %45 {approx = true} : vector<2x8x1xf32> -> vector<2x8x1xf32>
    %47 = vector.broadcast %46 : vector<2x8x1xf32> to vector<2x8x8xf32>
    %48 = arith.mulf %43, %47 : vector<2x8x8xf32>
    %49 = arith.truncf %48 : vector<2x8x8xf32> to vector<2x8x8xbf16>
    "tpu.trace_start"() <{level = 10 : i32, message = "bqk,bkd->bqd"}> : () -> ()
    %cst_16 = arith.constant dense<0.000000e+00> : vector<2x8x8xf32>
    %50 = tpu.matmul %49, %35, %cst_16 {dimension_numbers = #tpu.dot_dimension_numbers<[2], [1], [1], [2], [0, 0, 0, 1, 1, 2], [0], [0]>} : vector<2x8x8xbf16>, vector<2x8x8xbf16>, vector<2x8x8xf32> -> vector<2x8x8xf32>
    "tpu.trace_stop"() : () -> ()
    %51 = vector.extract_strided_slice %24 {offsets = [0, 0, 8], sizes = [2, 8, 8], strides = [1, 1, 1]} : vector<2x8x32xf32> to vector<2x8x8xf32>
    %52 = arith.truncf %51 : vector<2x8x8xf32> to vector<2x8x8xbf16>
    %53 = vector.extract_strided_slice %26 {offsets = [0, 0, 8], sizes = [2, 8, 8], strides = [1, 1, 1]} : vector<2x8x32xf32> to vector<2x8x8xf32>
    %54 = arith.truncf %53 : vector<2x8x8xf32> to vector<2x8x8xbf16>
    %55 = vector.extract_strided_slice %28 {offsets = [0, 0, 8], sizes = [2, 8, 8], strides = [1, 1, 1]} : vector<2x8x32xf32> to vector<2x8x8xf32>
    %56 = arith.truncf %55 : vector<2x8x8xf32> to vector<2x8x8xbf16>
    "tpu.trace_start"() <{level = 10 : i32, message = "bqd,bkd->bqk"}> : () -> ()
    %cst_17 = arith.constant dense<0.000000e+00> : vector<2x8x8xf32>
    %57 = tpu.matmul %52, %54, %cst_17 {dimension_numbers = #tpu.dot_dimension_numbers<[2], [2], [1], [1], [0, 0, 0, 1, 1, 1], [0], [0]>} : vector<2x8x8xbf16>, vector<2x8x8xbf16>, vector<2x8x8xf32> -> vector<2x8x8xf32>
    "tpu.trace_stop"() : () -> ()
    %58 = vector.broadcast %29 : vector<2x1x8xf32> to vector<2x8x8xf32>
    %59 = arith.addf %57, %58 : vector<2x8x8xf32>
    %cst_18 = arith.constant dense<0xFF800000> : vector<2x8xf32>
    %60 = vector.multi_reduction <maximumf>, %59, %cst_18 [2] : vector<2x8x8xf32> to vector<2x8xf32>
    %61 = vector.shape_cast %60 : vector<2x8xf32> to vector<2x8x1xf32>
    %62 = vector.broadcast %61 : vector<2x8x1xf32> to vector<2x8x8xf32>
    %63 = arith.subf %59, %62 : vector<2x8x8xf32>
    %64 = math.exp %63 : vector<2x8x8xf32>
    %cst_19 = arith.constant dense<0.000000e+00> : vector<2x8xf32>
    %65 = vector.multi_reduction <add>, %64, %cst_19 [2] : vector<2x8x8xf32> to vector<2x8xf32>
    %66 = vector.shape_cast %65 : vector<2x8xf32> to vector<2x8x1xf32>
    %67 = tpu.reciprocal %66 {approx = true} : vector<2x8x1xf32> -> vector<2x8x1xf32>
    %68 = vector.broadcast %67 : vector<2x8x1xf32> to vector<2x8x8xf32>
    %69 = arith.mulf %64, %68 : vector<2x8x8xf32>
    %70 = arith.truncf %69 : vector<2x8x8xf32> to vector<2x8x8xbf16>
    "tpu.trace_start"() <{level = 10 : i32, message = "bqk,bkd->bqd"}> : () -> ()
    %cst_20 = arith.constant dense<0.000000e+00> : vector<2x8x8xf32>
    %71 = tpu.matmul %70, %56, %cst_20 {dimension_numbers = #tpu.dot_dimension_numbers<[2], [1], [1], [2], [0, 0, 0, 1, 1, 2], [0], [0]>} : vector<2x8x8xbf16>, vector<2x8x8xbf16>, vector<2x8x8xf32> -> vector<2x8x8xf32>
    "tpu.trace_stop"() : () -> ()
    %72 = vector.extract_strided_slice %24 {offsets = [0, 0, 16], sizes = [2, 8, 8], strides = [1, 1, 1]} : vector<2x8x32xf32> to vector<2x8x8xf32>
    %73 = arith.truncf %72 : vector<2x8x8xf32> to vector<2x8x8xbf16>
    %74 = vector.extract_strided_slice %26 {offsets = [0, 0, 16], sizes = [2, 8, 8], strides = [1, 1, 1]} : vector<2x8x32xf32> to vector<2x8x8xf32>
    %75 = arith.truncf %74 : vector<2x8x8xf32> to vector<2x8x8xbf16>
    %76 = vector.extract_strided_slice %28 {offsets = [0, 0, 16], sizes = [2, 8, 8], strides = [1, 1, 1]} : vector<2x8x32xf32> to vector<2x8x8xf32>
    %77 = arith.truncf %76 : vector<2x8x8xf32> to vector<2x8x8xbf16>
    "tpu.trace_start"() <{level = 10 : i32, message = "bqd,bkd->bqk"}> : () -> ()
    %cst_21 = arith.constant dense<0.000000e+00> : vector<2x8x8xf32>
    %78 = tpu.matmul %73, %75, %cst_21 {dimension_numbers = #tpu.dot_dimension_numbers<[2], [2], [1], [1], [0, 0, 0, 1, 1, 1], [0], [0]>} : vector<2x8x8xbf16>, vector<2x8x8xbf16>, vector<2x8x8xf32> -> vector<2x8x8xf32>
    "tpu.trace_stop"() : () -> ()
    %79 = vector.broadcast %29 : vector<2x1x8xf32> to vector<2x8x8xf32>
    %80 = arith.addf %78, %79 : vector<2x8x8xf32>
    %cst_22 = arith.constant dense<0xFF800000> : vector<2x8xf32>
    %81 = vector.multi_reduction <maximumf>, %80, %cst_22 [2] : vector<2x8x8xf32> to vector<2x8xf32>
    %82 = vector.shape_cast %81 : vector<2x8xf32> to vector<2x8x1xf32>
    %83 = vector.broadcast %82 : vector<2x8x1xf32> to vector<2x8x8xf32>
    %84 = arith.subf %80, %83 : vector<2x8x8xf32>
    %85 = math.exp %84 : vector<2x8x8xf32>
    %cst_23 = arith.constant dense<0.000000e+00> : vector<2x8xf32>
    %86 = vector.multi_reduction <add>, %85, %cst_23 [2] : vector<2x8x8xf32> to vector<2x8xf32>
    %87 = vector.shape_cast %86 : vector<2x8xf32> to vector<2x8x1xf32>
    %88 = tpu.reciprocal %87 {approx = true} : vector<2x8x1xf32> -> vector<2x8x1xf32>
    %89 = vector.broadcast %88 : vector<2x8x1xf32> to vector<2x8x8xf32>
    %90 = arith.mulf %85, %89 : vector<2x8x8xf32>
    %91 = arith.truncf %90 : vector<2x8x8xf32> to vector<2x8x8xbf16>
    "tpu.trace_start"() <{level = 10 : i32, message = "bqk,bkd->bqd"}> : () -> ()
    %cst_24 = arith.constant dense<0.000000e+00> : vector<2x8x8xf32>
    %92 = tpu.matmul %91, %77, %cst_24 {dimension_numbers = #tpu.dot_dimension_numbers<[2], [1], [1], [2], [0, 0, 0, 1, 1, 2], [0], [0]>} : vector<2x8x8xbf16>, vector<2x8x8xbf16>, vector<2x8x8xf32> -> vector<2x8x8xf32>
    "tpu.trace_stop"() : () -> ()
    %93 = vector.extract_strided_slice %24 {offsets = [0, 0, 24], sizes = [2, 8, 8], strides = [1, 1, 1]} : vector<2x8x32xf32> to vector<2x8x8xf32>
    %94 = arith.truncf %93 : vector<2x8x8xf32> to vector<2x8x8xbf16>
    %95 = vector.extract_strided_slice %26 {offsets = [0, 0, 24], sizes = [2, 8, 8], strides = [1, 1, 1]} : vector<2x8x32xf32> to vector<2x8x8xf32>
    %96 = arith.truncf %95 : vector<2x8x8xf32> to vector<2x8x8xbf16>
    %97 = vector.extract_strided_slice %28 {offsets = [0, 0, 24], sizes = [2, 8, 8], strides = [1, 1, 1]} : vector<2x8x32xf32> to vector<2x8x8xf32>
    %98 = arith.truncf %97 : vector<2x8x8xf32> to vector<2x8x8xbf16>
    "tpu.trace_start"() <{level = 10 : i32, message = "bqd,bkd->bqk"}> : () -> ()
    %cst_25 = arith.constant dense<0.000000e+00> : vector<2x8x8xf32>
    %99 = tpu.matmul %94, %96, %cst_25 {dimension_numbers = #tpu.dot_dimension_numbers<[2], [2], [1], [1], [0, 0, 0, 1, 1, 1], [0], [0]>} : vector<2x8x8xbf16>, vector<2x8x8xbf16>, vector<2x8x8xf32> -> vector<2x8x8xf32>
    "tpu.trace_stop"() : () -> ()
    %100 = vector.broadcast %29 : vector<2x1x8xf32> to vector<2x8x8xf32>
    %101 = arith.addf %99, %100 : vector<2x8x8xf32>
    %cst_26 = arith.constant dense<0xFF800000> : vector<2x8xf32>
    %102 = vector.multi_reduction <maximumf>, %101, %cst_26 [2] : vector<2x8x8xf32> to vector<2x8xf32>
    %103 = vector.shape_cast %102 : vector<2x8xf32> to vector<2x8x1xf32>
    %104 = vector.broadcast %103 : vector<2x8x1xf32> to vector<2x8x8xf32>
    %105 = arith.subf %101, %104 : vector<2x8x8xf32>
    %106 = math.exp %105 : vector<2x8x8xf32>
    %cst_27 = arith.constant dense<0.000000e+00> : vector<2x8xf32>
    %107 = vector.multi_reduction <add>, %106, %cst_27 [2] : vector<2x8x8xf32> to vector<2x8xf32>
    %108 = vector.shape_cast %107 : vector<2x8xf32> to vector<2x8x1xf32>
    %109 = tpu.reciprocal %108 {approx = true} : vector<2x8x1xf32> -> vector<2x8x1xf32>
    %110 = vector.broadcast %109 : vector<2x8x1xf32> to vector<2x8x8xf32>
    %111 = arith.mulf %106, %110 : vector<2x8x8xf32>
    %112 = arith.truncf %111 : vector<2x8x8xf32> to vector<2x8x8xbf16>
    "tpu.trace_start"() <{level = 10 : i32, message = "bqk,bkd->bqd"}> : () -> ()
    %cst_28 = arith.constant dense<0.000000e+00> : vector<2x8x8xf32>
    %113 = tpu.matmul %112, %98, %cst_28 {dimension_numbers = #tpu.dot_dimension_numbers<[2], [1], [1], [2], [0, 0, 0, 1, 1, 2], [0], [0]>} : vector<2x8x8xbf16>, vector<2x8x8xbf16>, vector<2x8x8xf32> -> vector<2x8x8xf32>
    "tpu.trace_stop"() : () -> ()
    %114 = tpu.concatenate %50, %71, %92, %113 in 2 : vector<2x8x8xf32>, vector<2x8x8xf32>, vector<2x8x8xf32>, vector<2x8x8xf32> -> vector<2x8x32xf32>
    %115 = vector.shape_cast %114 : vector<2x8x32xf32> to vector<16x32xf32>
    %c0_29 = arith.constant 0 : index
    %c0_30 = arith.constant 0 : index
    %c0_31 = arith.constant 0 : index
    %c0_32 = arith.constant 0 : index
    %116 = vector.load %arg6[%c0_29, %c0_30, %c0_31, %c0_32] : memref<1x1x32x32xbf16, #tpu.memory_space<vmem>>, vector<1x1x32x32xbf16>
    %117 = vector.shape_cast %116 : vector<1x1x32x32xbf16> to vector<32x32xbf16>
    %118 = arith.truncf %115 : vector<16x32xf32> to vector<16x32xbf16>
    %cst_33 = arith.constant dense<0.000000e+00> : vector<16x32xf32>
    %119 = tpu.matmul %118, %117, %cst_33 {dimension_numbers = #tpu.dot_dimension_numbers<[1], [0], [0], [1], [0, 0, 1, 1], [], []>} : vector<16x32xbf16>, vector<32x32xbf16>, vector<16x32xf32> -> vector<16x32xf32>
    %120 = vector.broadcast %8 : vector<1x32xf32> to vector<16x32xf32>
    %121 = arith.addf %119, %120 : vector<16x32xf32>
    %122 = arith.addf %121, %3 : vector<16x32xf32>
    %cst_34 = arith.constant dense<0.000000e+00> : vector<16xf32>
    %123 = vector.multi_reduction <add>, %122, %cst_34 [1] : vector<16x32xf32> to vector<16xf32>
    %124 = vector.shape_cast %123 : vector<16xf32> to vector<16x1xf32>
    %cst_35 = arith.constant 3.200000e+01 : f32
    %125 = vector.broadcast %cst_35 : f32 to vector<16x1xf32>
    %126 = arith.divf %124, %125 : vector<16x1xf32>
    %127 = vector.broadcast %126 : vector<16x1xf32> to vector<16x32xf32>
    %128 = arith.subf %122, %127 : vector<16x32xf32>
    %129 = arith.mulf %128, %128 : vector<16x32xf32>
    %cst_36 = arith.constant dense<0.000000e+00> : vector<16xf32>
    %130 = vector.multi_reduction <add>, %129, %cst_36 [1] : vector<16x32xf32> to vector<16xf32>
    %131 = vector.shape_cast %130 : vector<16xf32> to vector<16x1xf32>
    %cst_37 = arith.constant 3.200000e+01 : f32
    %132 = vector.broadcast %cst_37 : f32 to vector<16x1xf32>
    %133 = arith.divf %131, %132 : vector<16x1xf32>
    %cst_38 = arith.constant 9.99999996E-13 : f32
    %134 = vector.broadcast %cst_38 : f32 to vector<16x1xf32>
    %135 = arith.addf %133, %134 : vector<16x1xf32>
    %136 = math.rsqrt %135 : vector<16x1xf32>
    %137 = vector.broadcast %136 : vector<16x1xf32> to vector<16x32xf32>
    %138 = arith.mulf %128, %137 : vector<16x32xf32>
    %139 = vector.broadcast %9 : vector<1x32xf32> to vector<16x32xf32>
    %140 = arith.mulf %138, %139 : vector<16x32xf32>
    %141 = vector.broadcast %10 : vector<1x32xf32> to vector<16x32xf32>
    %142 = arith.addf %140, %141 : vector<16x32xf32>
    %c0_39 = arith.constant 0 : index
    %c0_40 = arith.constant 0 : index
    %c0_41 = arith.constant 0 : index
    %c0_42 = arith.constant 0 : index
    %143 = vector.load %arg7[%c0_39, %c0_40, %c0_41, %c0_42] : memref<1x1x32x64xbf16, #tpu.memory_space<vmem>>, vector<1x1x32x64xbf16>
    %144 = vector.shape_cast %143 : vector<1x1x32x64xbf16> to vector<32x64xbf16>
    %145 = arith.truncf %142 : vector<16x32xf32> to vector<16x32xbf16>
    %cst_43 = arith.constant dense<0.000000e+00> : vector<16x64xf32>
    %146 = tpu.matmul %145, %144, %cst_43 {dimension_numbers = #tpu.dot_dimension_numbers<[1], [0], [0], [1], [0, 0, 1, 1], [], []>} : vector<16x32xbf16>, vector<32x64xbf16>, vector<16x64xf32> -> vector<16x64xf32>
    %147 = vector.broadcast %11 : vector<1x64xf32> to vector<16x64xf32>
    %148 = arith.addf %146, %147 : vector<16x64xf32>
    %cst_44 = arith.constant 5.000000e-01 : f32
    %149 = vector.broadcast %cst_44 : f32 to vector<16x64xf32>
    %150 = arith.mulf %149, %148 : vector<16x64xf32>
    %cst_45 = arith.constant 4.471500e-02 : f32
    %151 = vector.broadcast %cst_45 : f32 to vector<16x64xf32>
    %152 = arith.mulf %151, %148 : vector<16x64xf32>
    %153 = arith.mulf %152, %148 : vector<16x64xf32>
    %154 = arith.mulf %153, %148 : vector<16x64xf32>
    %155 = arith.addf %148, %154 : vector<16x64xf32>
    %cst_46 = arith.constant 0.797884583 : f32
    %156 = vector.broadcast %cst_46 : f32 to vector<16x64xf32>
    %157 = arith.mulf %156, %155 : vector<16x64xf32>
    %158 = math.tanh %157 : vector<16x64xf32>
    %cst_47 = arith.constant 1.000000e+00 : f32
    %159 = vector.broadcast %cst_47 : f32 to vector<16x64xf32>
    %160 = arith.addf %159, %158 : vector<16x64xf32>
    %161 = arith.mulf %150, %160 : vector<16x64xf32>
    %c0_48 = arith.constant 0 : index
    %c0_49 = arith.constant 0 : index
    %c0_50 = arith.constant 0 : index
    %c0_51 = arith.constant 0 : index
    %162 = vector.load %arg8[%c0_48, %c0_49, %c0_50, %c0_51] : memref<1x1x64x32xbf16, #tpu.memory_space<vmem>>, vector<1x1x64x32xbf16>
    %163 = vector.shape_cast %162 : vector<1x1x64x32xbf16> to vector<64x32xbf16>
    %164 = arith.truncf %161 : vector<16x64xf32> to vector<16x64xbf16>
    %cst_52 = arith.constant dense<0.000000e+00> : vector<16x32xf32>
    %165 = tpu.matmul %164, %163, %cst_52 {dimension_numbers = #tpu.dot_dimension_numbers<[1], [0], [0], [1], [0, 0, 1, 1], [], []>} : vector<16x64xbf16>, vector<64x32xbf16>, vector<16x32xf32> -> vector<16x32xf32>
    %166 = vector.broadcast %12 : vector<1x32xf32> to vector<16x32xf32>
    %167 = arith.addf %165, %166 : vector<16x32xf32>
    %168 = arith.addf %167, %142 : vector<16x32xf32>
    %cst_53 = arith.constant dense<0.000000e+00> : vector<16xf32>
    %169 = vector.multi_reduction <add>, %168, %cst_53 [1] : vector<16x32xf32> to vector<16xf32>
    %170 = vector.shape_cast %169 : vector<16xf32> to vector<16x1xf32>
    %cst_54 = arith.constant 3.200000e+01 : f32
    %171 = vector.broadcast %cst_54 : f32 to vector<16x1xf32>
    %172 = arith.divf %170, %171 : vector<16x1xf32>
    %173 = vector.broadcast %172 : vector<16x1xf32> to vector<16x32xf32>
    %174 = arith.subf %168, %173 : vector<16x32xf32>
    %175 = arith.mulf %174, %174 : vector<16x32xf32>
    %cst_55 = arith.constant dense<0.000000e+00> : vector<16xf32>
    %176 = vector.multi_reduction <add>, %175, %cst_55 [1] : vector<16x32xf32> to vector<16xf32>
    %177 = vector.shape_cast %176 : vector<16xf32> to vector<16x1xf32>
    %cst_56 = arith.constant 3.200000e+01 : f32
    %178 = vector.broadcast %cst_56 : f32 to vector<16x1xf32>
    %179 = arith.divf %177, %178 : vector<16x1xf32>
    %cst_57 = arith.constant 9.99999996E-13 : f32
    %180 = vector.broadcast %cst_57 : f32 to vector<16x1xf32>
    %181 = arith.addf %179, %180 : vector<16x1xf32>
    %182 = math.rsqrt %181 : vector<16x1xf32>
    %183 = vector.broadcast %182 : vector<16x1xf32> to vector<16x32xf32>
    %184 = arith.mulf %174, %183 : vector<16x32xf32>
    %185 = vector.broadcast %13 : vector<1x32xf32> to vector<16x32xf32>
    %186 = arith.mulf %184, %185 : vector<16x32xf32>
    %187 = vector.broadcast %14 : vector<1x32xf32> to vector<16x32xf32>
    %188 = arith.addf %186, %187 : vector<16x32xf32>
    %c0_58 = arith.constant 0 : index
    %c0_59 = arith.constant 0 : index
    %189 = vector.load %arg15[%c0_58, %c0_59] : memref<16x32xf32, #tpu.memory_space<vmem>>, vector<16x32xf32>
    tpu.vector_store %arg15[%c0_58, %c0_59], %188 {strides = array<i32>} : memref<16x32xf32, #tpu.memory_space<vmem>>, vector<16x32xf32>,
    %c1_i32 = arith.constant 1 : i32
    %190 = arith.cmpi eq, %arg1, %c1_i32 : i32
    %191 = arith.extui %190 : i1 to i32
    %c0_i32_60 = arith.constant 0 : i32
    %192 = arith.cmpi ne, %191, %c0_i32_60 : i32
    scf.if %192 {
      %c0_61 = arith.constant 0 : index
      %c0_62 = arith.constant 0 : index
      %193 = tpu.strided_load %arg15[%c0_61, %c0_62] {strides = array<i32: 8, 1>} : memref<16x32xf32, #tpu.memory_space<vmem>>, vector<2x32xf32>
      %c0_63 = arith.constant 0 : index
      %c0_64 = arith.constant 0 : index
      %c0_65 = arith.constant 0 : index
      %194 = vector.load %arg10[%c0_63, %c0_64, %c0_65] : memref<1x32x32xbf16, #tpu.memory_space<vmem>>, vector<1x32x32xbf16>
      %195 = vector.shape_cast %194 : vector<1x32x32xbf16> to vector<32x32xbf16>
      %196 = arith.truncf %193 : vector<2x32xf32> to vector<2x32xbf16>
      %cst_66 = arith.constant dense<0.000000e+00> : vector<2x32xf32>
      %197 = tpu.matmul %196, %195, %cst_66 {dimension_numbers = #tpu.dot_dimension_numbers<[1], [0], [0], [1], [0, 0, 1, 1], [], []>} : vector<2x32xbf16>, vector<32x32xbf16>, vector<2x32xf32> -> vector<2x32xf32>
      %c0_67 = arith.constant 0 : index
      %c0_68 = arith.constant 0 : index
      %c0_69 = arith.constant 0 : index
      %198 = vector.load %arg11[%c0_67, %c0_68, %c0_69] : memref<1x1x32xf32, #tpu.memory_space<vmem>>, vector<1x1x32xf32>
      %199 = vector.shape_cast %198 : vector<1x1x32xf32> to vector<1x32xf32>
      %200 = vector.broadcast %199 : vector<1x32xf32> to vector<2x32xf32>
      %201 = arith.addf %197, %200 : vector<2x32xf32>
      %202 = math.tanh %201 : vector<2x32xf32>
      %203 = arith.index_cast %arg0 : i32 to index
      %c0_70 = arith.constant 0 : index
      %c0_71 = arith.constant 0 : index
      %204 = vector.load %arg16[%203, %c0_70, %c0_71] : memref<2x2x32xf32, #tpu.memory_space<vmem>>, vector<1x2x32xf32>
      %205 = vector.shape_cast %204 : vector<1x2x32xf32> to vector<2x32xf32>
      %206 = vector.shape_cast %202 : vector<2x32xf32> to vector<1x2x32xf32>
      tpu.vector_store %arg16[%203, %c0_70, %c0_71], %206 {strides = array<i32>} : memref<2x2x32xf32, #tpu.memory_space<vmem>>, vector<1x2x32xf32>,
      %c1_i32_72 = arith.constant 1 : i32
      %207 = arith.cmpi eq, %arg0, %c1_i32_72 : i32
      %208 = arith.extui %207 : i1 to i32
      %c0_i32_73 = arith.constant 0 : i32
      %209 = arith.cmpi ne, %208, %c0_i32_73 : i32
      scf.if %209 {
        %c1 = arith.constant 1 : index
        %c0_74 = arith.constant 0 : index
        %c0_75 = arith.constant 0 : index
        %210 = vector.load %arg16[%c1, %c0_74, %c0_75] : memref<2x2x32xf32, #tpu.memory_space<vmem>>, vector<1x2x32xf32>
        %211 = vector.shape_cast %210 : vector<1x2x32xf32> to vector<2x32xf32>
        %c0_76 = arith.constant 0 : index
        %c0_77 = arith.constant 0 : index
        %c0_78 = arith.constant 0 : index
        %212 = vector.load %arg16[%c0_76, %c0_77, %c0_78] : memref<2x2x32xf32, #tpu.memory_space<vmem>>, vector<1x2x32xf32>
        %213 = vector.shape_cast %212 : vector<1x2x32xf32> to vector<2x32xf32>
        %214 = tpu.concatenate %211, %213 in 1 : vector<2x32xf32>, vector<2x32xf32> -> vector<2x64xf32>
        %c0_79 = arith.constant 0 : index
        %c0_80 = arith.constant 0 : index
        %215 = vector.load %arg12[%c0_79, %c0_80] : memref<64x128xbf16, #tpu.memory_space<vmem>>, vector<64x128xbf16>
        %216 = arith.truncf %214 : vector<2x64xf32> to vector<2x64xbf16>
        %cst_81 = arith.constant dense<0.000000e+00> : vector<2x128xf32>
        %217 = tpu.matmul %216, %215, %cst_81 {dimension_numbers = #tpu.dot_dimension_numbers<[1], [0], [0], [1], [0, 0, 1, 1], [], []>} : vector<2x64xbf16>, vector<64x128xbf16>, vector<2x128xf32> -> vector<2x128xf32>
        %c0_82 = arith.constant 0 : index
        %c0_83 = arith.constant 0 : index
        %218 = vector.load %arg13[%c0_82, %c0_83] : memref<1x128xf32, #tpu.memory_space<vmem>>, vector<1x128xf32>
        %219 = vector.broadcast %218 : vector<1x128xf32> to vector<2x128xf32>
        %220 = arith.addf %217, %219 : vector<2x128xf32>
        %c0_84 = arith.constant 0 : index
        %c0_85 = arith.constant 0 : index
        %221 = vector.load %arg14[%c0_84, %c0_85] : memref<2x128xf32, #tpu.memory_space<vmem>>, vector<2x128xf32>
        tpu.vector_store %arg14[%c0_84, %c0_85], %220 {strides = array<i32>} : memref<2x128xf32, #tpu.memory_space<vmem>>, vector<2x128xf32>,
      } else {
      }
    } else {
    }
    return
  }
  func.func @transform_0(%arg0: i32, %arg1: i32) -> (i32, i32) {
    %c0_i32 = arith.constant 0 : i32
    %c0_i32_0 = arith.constant 0 : i32
    %c0_i32_1 = arith.constant 0 : i32
    return %c0_i32, %c0_i32_0 : i32, i32
  }
  func.func @transform_1(%arg0: i32, %arg1: i32) -> (i32, i32) {
    %c0_i32 = arith.constant 0 : i32
    %c0_i32_0 = arith.constant 0 : i32
    %c0_i32_1 = arith.constant 0 : i32
    return %c0_i32, %c0_i32_0 : i32, i32
  }
  func.func @transform_2(%arg0: i32, %arg1: i32) -> (i32, i32) {
    %c0_i32 = arith.constant 0 : i32
    %c0_i32_0 = arith.constant 0 : i32
    %c0_i32_1 = arith.constant 0 : i32
    return %c0_i32, %c0_i32_0 : i32, i32
  }
  func.func @transform_3(%arg0: i32, %arg1: i32) -> (i32, i32, i32, i32) {
    %c0_i32 = arith.constant 0 : i32
    %c0_i32_0 = arith.constant 0 : i32
    %c0_i32_1 = arith.constant 0 : i32
    return %arg0, %arg1, %c0_i32, %c0_i32_0 : i32, i32, i32, i32
  }
  func.func @transform_4(%arg0: i32, %arg1: i32) -> (i32, i32, i32, i32) {
    %c0_i32 = arith.constant 0 : i32
    %c0_i32_0 = arith.constant 0 : i32
    %c0_i32_1 = arith.constant 0 : i32
    return %arg0, %arg1, %c0_i32, %c0_i32_0 : i32, i32, i32, i32
  }
  func.func @transform_5(%arg0: i32, %arg1: i32) -> (i32, i32, i32, i32) {
    %c0_i32 = arith.constant 0 : i32
    %c0_i32_0 = arith.constant 0 : i32
    %c0_i32_1 = arith.constant 0 : i32
    return %arg0, %arg1, %c0_i32, %c0_i32_0 : i32, i32, i32, i32
  }
  func.func @transform_6(%arg0: i32, %arg1: i32) -> (i32, i32, i32, i32) {
    %c0_i32 = arith.constant 0 : i32
    %c0_i32_0 = arith.constant 0 : i32
    %c0_i32_1 = arith.constant 0 : i32
    return %arg0, %arg1, %c0_i32, %c0_i32_0 : i32, i32, i32, i32
  }
  func.func @transform_7(%arg0: i32, %arg1: i32) -> (i32, i32, i32, i32) {
    %c0_i32 = arith.constant 0 : i32
    %c0_i32_0 = arith.constant 0 : i32
    %c0_i32_1 = arith.constant 0 : i32
    return %arg0, %arg1, %c0_i32, %c0_i32_0 : i32, i32, i32, i32
  }
  func.func @transform_8(%arg0: i32, %arg1: i32) -> (i32, i32, i32) {
    %c0_i32 = arith.constant 0 : i32
    %c0_i32_0 = arith.constant 0 : i32
    %c0_i32_1 = arith.constant 0 : i32
    return %arg0, %c0_i32, %c0_i32_0 : i32, i32, i32
  }
  func.func @transform_9(%arg0: i32, %arg1: i32) -> (i32, i32, i32) {
    %c0_i32 = arith.constant 0 : i32
    %c0_i32_0 = arith.constant 0 : i32
    %c0_i32_1 = arith.constant 0 : i32
    return %arg0, %c0_i32, %c0_i32_0 : i32, i32, i32
  }
  func.func @transform_10(%arg0: i32, %arg1: i32) -> (i32, i32) {
    %c0_i32 = arith.constant 0 : i32
    %c0_i32_0 = arith.constant 0 : i32
    %c0_i32_1 = arith.constant 0 : i32
    return %c0_i32, %c0_i32_0 : i32, i32
  }
  func.func @transform_11(%arg0: i32, %arg1: i32) -> (i32, i32) {
    %c0_i32 = arith.constant 0 : i32
    %c0_i32_0 = arith.constant 0 : i32
    %c0_i32_1 = arith.constant 0 : i32
    return %c0_i32, %c0_i32_0 : i32, i32
  }
  func.func @transform_12(%arg0: i32, %arg1: i32) -> (i32, i32) {
    %c0_i32 = arith.constant 0 : i32
    %c0_i32_0 = arith.constant 0 : i32
    %c0_i32_1 = arith.constant 0 : i32
    return %c0_i32, %c0_i32_0 : i32, i32
  }
}

</mosaic_0001>

<llo_original>
// kernel: nbert_forward.1
$region0: #{nbert_forward.1}
  #allocation0 [shape = 'u32[]', space=smem, size = 0x4, offset = 0x4, fixed_abs, tag = 'smem constant byte address 0x4 - core index']
  #allocation1 [shape = 'u32[144,128]{1,0:T(1,128)}', space=vmem, size = 0x12000, scoped, tag = 'internal scratch']
  #allocation2 [shape = 'f32[16,32]{1,0:T(8,128)}', space=vmem, size = 0x2000, scoped, tag = 'scratch operand']
  #allocation3 [shape = 'f32[2,2,32]{2,1,0:T(2,128)}', space=vmem, size = 0x800, scoped, tag = 'scratch operand']
  %s0 = inlined_call_operand.vmem [shape: f32[16,32], index: 0, kind: input, shape index: {}]
  %s1 = inlined_call_operand.vmem [shape: f32[2,8], index: 1, kind: input, shape index: {}]
  %s2 = inlined_call_operand.vmem [shape: f32[2,32], index: 2, kind: input, shape index: {}]
  %s3 = inlined_call_operand.vmem [shape: bf16[2,2,32,96], index: 3, kind: input, shape index: {}]
  %s4 = inlined_call_operand.vmem [shape: bf16[2,2,32,32], index: 4, kind: input, shape index: {}]
  %s5 = inlined_call_operand.vmem [shape: bf16[2,2,32,64], index: 5, kind: input, shape index: {}]
  %s6 = inlined_call_operand.vmem [shape: bf16[2,2,64,32], index: 6, kind: input, shape index: {}]
  %s7 = inlined_call_operand.vmem [shape: f32[2,2,8,128], index: 7, kind: input, shape index: {}]
  %s8 = inlined_call_operand.vmem [shape: bf16[2,32,32], index: 8, kind: input, shape index: {}]
  %s9 = inlined_call_operand.vmem [shape: f32[2,1,32], index: 9, kind: input, shape index: {}]
  %s10 = inlined_call_operand.vmem [shape: bf16[64,128], index: 10, kind: input, shape index: {}]
  %s11 = inlined_call_operand.vmem [shape: f32[1,128], index: 11, kind: input, shape index: {}]
  %s12 = inlined_call_operand.hbm [shape: f32[2,128], index: 12, kind: output, shape index: {}]
  %s13 = sld [smem:[#allocation0]]
  $region93: #{nbert_forward.1} parent=0
    _
  %s15 = ssub.s32 1, %s13
  %s16 = scalar_select 0, %s15, %s13
  $region1: #{nbert_forward.1} parent=0
    #allocation4 [shape = 'u8[1024]{0}', space=vmem, size = 0x400, scoped, tag = 'output window, operand 0, single buffered']
    #allocation5 [shape = 's32[2]{0}', space=sflag, size = 0x8, scoped, tag = 'scoped memory for nbert_forward.1']
    %17 = vsyncpa [#allocation5], 0
    loop: start=0, step=1, limit=6
    $region2: #{nbert_forward.1} parent=1 // loop_pre_header
      _
    $region3: #{nbert_forward.1} parent=1 // loop_header
      %s19 = sphi 0, %s23
      %p20 = scmp.ge.s32.totalorder %s19, 6
      %s26 = sphi 0, %s38
      %s27 = sphi 0, %s34
      %s28 = sphi 0, %s26
      %s29 = sphi 0, %s27
      %s30 = sphi 0, %s28
      %s31 = sphi 0, %s29
      %s39 = sphi 0, %s39
      %s41 = sphi 0, %s39
      %s42 = sphi 0, %s41
      %s56 = sphi 0, %s42
      %s60 = sphi 0, %s60
      %s62 = sphi 0, %s60
      %s63 = sphi 0, %s62
      %s77 = sphi 0, %s63
      %s81 = sphi 0, %s81
      %s83 = sphi 0, %s81
      %s84 = sphi 0, %s83
      %s98 = sphi 0, %s84
      %s106 = sphi 0, %s108
      %s109 = sphi 0, %s106
      %s110 = sphi 0, %s109
      %s126 = sphi 0, %s110
      %s134 = sphi 0, %s136
      %s137 = sphi 0, %s134
      %s138 = sphi 0, %s137
      %s154 = sphi 0, %s138
      %s162 = sphi 0, %s164
      %s165 = sphi 0, %s162
      %s166 = sphi 0, %s165
      %s182 = sphi 0, %s166
      %s190 = sphi 0, %s192
      %s193 = sphi 0, %s190
      %s194 = sphi 0, %s193
      %s210 = sphi 0, %s194
      %s218 = sphi 0, %s220
      %s221 = sphi 0, %s218
      %s222 = sphi 0, %s221
      %s238 = sphi 0, %s222
      %s244 = sphi 0, %s246
      %s247 = sphi 0, %s244
      %s248 = sphi 0, %s247
      %s264 = sphi 0, %s248
      %s270 = sphi 0, %s272
      %s273 = sphi 0, %s270
      %s274 = sphi 0, %s273
      %s290 = sphi 0, %s274
      %s294 = sphi 0, %s294
      %s296 = sphi 0, %s294
      %s297 = sphi 0, %s296
      %s311 = sphi 0, %s297
      %s315 = sphi 0, %s315
      %s317 = sphi 0, %s315
      %s318 = sphi 0, %s317
      %s332 = sphi 0, %s318
      %s336 = sphi 0, %s336
      %s338 = sphi 0, %s336
      %s339 = sphi 0, %s338
      %s353 = sphi 0, %s339
    $region4: #{nbert_forward.1} parent=1 // loop_header_branch
      %22 = sbr.rel (%p20) target = $region8
    $region5: #{nbert_forward.1} parent=1 // loop_body
      %s24 = ssub.s32 %s19, 1
      %s25 = ssub.s32 %s19, 2
      %s32 = sadd.s32 1, %s27
      %p33 = scmp.ge.s32.totalorder %s32, 2
      %s34 = scalar_select %p33, 0, %s32
      %s35 = sadd.s32 1, %s26
      %s36 = scalar_select %p33, %s35, %s26
      %p37 = scmp.ge.s32.totalorder %s36, 2
      %s38 = scalar_select %p37, 0, %s36
      %s40 = sadd.s32 %s39, 1
      %p43 = scmp.eq.s32.totalorder %s19, 3
      %p44 = scmp.ne.s32.totalorder %s39, %s41
      %p45 = scmp.eq.s32.totalorder %s19, 0
      %p46 = por %p44, %p45
      %p47 = scmp.ne.s32.totalorder %s39, %s41
      %p48 = scmp.eq.s32.totalorder %s24, 3
      %p49 = por %p47, %p48
      %p50 = scmp.ne.s32.totalorder %s41, %s42
      %p51 = scmp.eq.s32.totalorder %s24, 0
      %p52 = por %p50, %p51
      %p53 = scmp.ne.s32.totalorder %s41, %s42
      %p54 = scmp.eq.s32.totalorder %s25, 3
      %p55 = por %p53, %p54
      %p57 = scmp.ne.s32.totalorder %s42, %s56
      %p58 = scmp.eq.s32.totalorder %s25, 0
      %p59 = por %p57, %p58
      %s61 = sadd.s32 %s60, 1
      %p64 = scmp.eq.s32.totalorder %s19, 3
      %p65 = scmp.ne.s32.totalorder %s60, %s62
      %p66 = scmp.eq.s32.totalorder %s19, 0
      %p67 = por %p65, %p66
      %p68 = scmp.ne.s32.totalorder %s60, %s62
      %p69 = scmp.eq.s32.totalorder %s24, 3
      %p70 = por %p68, %p69
      %p71 = scmp.ne.s32.totalorder %s62, %s63
      %p72 = scmp.eq.s32.totalorder %s24, 0
      %p73 = por %p71, %p72
      %p74 = scmp.ne.s32.totalorder %s62, %s63
      %p75 = scmp.eq.s32.totalorder %s25, 3
      %p76 = por %p74, %p75
      %p78 = scmp.ne.s32.totalorder %s63, %s77
      %p79 = scmp.eq.s32.totalorder %s25, 0
      %p80 = por %p78, %p79
      %s82 = sadd.s32 %s81, 1
      %p85 = scmp.eq.s32.totalorder %s19, 3
      %p86 = scmp.ne.s32.totalorder %s81, %s83
      %p87 = scmp.eq.s32.totalorder %s19, 0
      %p88 = por %p86, %p87
      %p89 = scmp.ne.s32.totalorder %s81, %s83
      %p90 = scmp.eq.s32.totalorder %s24, 3
      %p91 = por %p89, %p90
      %p92 = scmp.ne.s32.totalorder %s83, %s84
      %p93 = scmp.eq.s32.totalorder %s24, 0
      %p94 = por %p92, %p93
      %p95 = scmp.ne.s32.totalorder %s83, %s84
      %p96 = scmp.eq.s32.totalorder %s25, 3
      %p97 = por %p95, %p96
      %p99 = scmp.ne.s32.totalorder %s84, %s98
      %p100 = scmp.eq.s32.totalorder %s25, 0
      %p101 = por %p99, %p100
      %s102 = ssub.s32 %s26, %s38
      %s103 = ssub.s32 %s27, %s34
      %s104 = sor.u32 %s102, %s103
      %p105 = scmp.eq.s32.totalorder %s104, 0
      %s107 = sadd.s32 %s106, 1
      %s108 = scalar_select %p105, %s106, %s107
      %p111 = pneg %p105
      %p112 = scmp.eq.s32.totalorder %s19, 3
      %p113 = por %p111, %p112
      %p114 = scmp.ne.s32.totalorder %s106, %s109
      %p115 = scmp.eq.s32.totalorder %s19, 0
      %p116 = por %p114, %p115
      %p117 = scmp.ne.s32.totalorder %s106, %s109
      %p118 = scmp.eq.s32.totalorder %s24, 3
      %p119 = por %p117, %p118
      %p120 = scmp.ne.s32.totalorder %s109, %s110
      %p121 = scmp.eq.s32.totalorder %s24, 0
      %p122 = por %p120, %p121
      %p123 = scmp.ne.s32.totalorder %s109, %s110
      %p124 = scmp.eq.s32.totalorder %s25, 3
      %p125 = por %p123, %p124
      %p127 = scmp.ne.s32.totalorder %s110, %s126
      %p128 = scmp.eq.s32.totalorder %s25, 0
      %p129 = por %p127, %p128
      %s130 = ssub.s32 %s26, %s38
      %s131 = ssub.s32 %s27, %s34
      %s132 = sor.u32 %s130, %s131
      %p133 = scmp.eq.s32.totalorder %s132, 0
      %s135 = sadd.s32 %s134, 1
      %s136 = scalar_select %p133, %s134, %s135
      %p139 = pneg %p133
      %p140 = scmp.eq.s32.totalorder %s19, 3
      %p141 = por %p139, %p140
      %p142 = scmp.ne.s32.totalorder %s134, %s137
      %p143 = scmp.eq.s32.totalorder %s19, 0
      %p144 = por %p142, %p143
      %p145 = scmp.ne.s32.totalorder %s134, %s137
      %p146 = scmp.eq.s32.totalorder %s24, 3
      %p147 = por %p145, %p146
      %p148 = scmp.ne.s32.totalorder %s137, %s138
      %p149 = scmp.eq.s32.totalorder %s24, 0
      %p150 = por %p148, %p149
      %p151 = scmp.ne.s32.totalorder %s137, %s138
      %p152 = scmp.eq.s32.totalorder %s25, 3
      %p153 = por %p151, %p152
      %p155 = scmp.ne.s32.totalorder %s138, %s154
      %p156 = scmp.eq.s32.totalorder %s25, 0
      %p157 = por %p155, %p156
      %s158 = ssub.s32 %s26, %s38
      %s159 = ssub.s32 %s27, %s34
      %s160 = sor.u32 %s158, %s159
      %p161 = scmp.eq.s32.totalorder %s160, 0
      %s163 = sadd.s32 %s162, 1
      %s164 = scalar_select %p161, %s162, %s163
      %p167 = pneg %p161
      %p168 = scmp.eq.s32.totalorder %s19, 3
      %p169 = por %p167, %p168
      %p170 = scmp.ne.s32.totalorder %s162, %s165
      %p171 = scmp.eq.s32.totalorder %s19, 0
      %p172 = por %p170, %p171
      %p173 = scmp.ne.s32.totalorder %s162, %s165
      %p174 = scmp.eq.s32.totalorder %s24, 3
      %p175 = por %p173, %p174
      %p176 = scmp.ne.s32.totalorder %s165, %s166
      %p177 = scmp.eq.s32.totalorder %s24, 0
      %p178 = por %p176, %p177
      %p179 = scmp.ne.s32.totalorder %s165, %s166
      %p180 = scmp.eq.s32.totalorder %s25, 3
      %p181 = por %p179, %p180
      %p183 = scmp.ne.s32.totalorder %s166, %s182
      %p184 = scmp.eq.s32.totalorder %s25, 0
      %p185 = por %p183, %p184
      %s186 = ssub.s32 %s26, %s38
      %s187 = ssub.s32 %s27, %s34
      %s188 = sor.u32 %s186, %s187
      %p189 = scmp.eq.s32.totalorder %s188, 0
      %s191 = sadd.s32 %s190, 1
      %s192 = scalar_select %p189, %s190, %s191
      %p195 = pneg %p189
      %p196 = scmp.eq.s32.totalorder %s19, 3
      %p197 = por %p195, %p196
      %p198 = scmp.ne.s32.totalorder %s190, %s193
      %p199 = scmp.eq.s32.totalorder %s19, 0
      %p200 = por %p198, %p199
      %p201 = scmp.ne.s32.totalorder %s190, %s193
      %p202 = scmp.eq.s32.totalorder %s24, 3
      %p203 = por %p201, %p202
      %p204 = scmp.ne.s32.totalorder %s193, %s194
      %p205 = scmp.eq.s32.totalorder %s24, 0
      %p206 = por %p204, %p205
      %p207 = scmp.ne.s32.totalorder %s193, %s194
      %p208 = scmp.eq.s32.totalorder %s25, 3
      %p209 = por %p207, %p208
      %p211 = scmp.ne.s32.totalorder %s194, %s210
      %p212 = scmp.eq.s32.totalorder %s25, 0
      %p213 = por %p211, %p212
      %s214 = ssub.s32 %s26, %s38
      %s215 = ssub.s32 %s27, %s34
      %s216 = sor.u32 %s214, %s215
      %p217 = scmp.eq.s32.totalorder %s216, 0
      %s219 = sadd.s32 %s218, 1
      %s220 = scalar_select %p217, %s218, %s219
      %p223 = pneg %p217
      %p224 = scmp.eq.s32.totalorder %s19, 3
      %p225 = por %p223, %p224
      %p226 = scmp.ne.s32.totalorder %s218, %s221
      %p227 = scmp.eq.s32.totalorder %s19, 0
      %p228 = por %p226, %p227
      %p229 = scmp.ne.s32.totalorder %s218, %s221
      %p230 = scmp.eq.s32.totalorder %s24, 3
      %p231 = por %p229, %p230
      %p232 = scmp.ne.s32.totalorder %s221, %s222
      %p233 = scmp.eq.s32.totalorder %s24, 0
      %p234 = por %p232, %p233
      %p235 = scmp.ne.s32.totalorder %s221, %s222
      %p236 = scmp.eq.s32.totalorder %s25, 3
      %p237 = por %p235, %p236
      %p239 = scmp.ne.s32.totalorder %s222, %s238
      %p240 = scmp.eq.s32.totalorder %s25, 0
      %p241 = por %p239, %p240
      %s242 = ssub.s32 %s26, %s38
      %p243 = scmp.eq.s32.totalorder %s242, 0
      %s245 = sadd.s32 %s244, 1
      %s246 = scalar_select %p243, %s244, %s245
      %p249 = pneg %p243
      %p250 = scmp.eq.s32.totalorder %s19, 3
      %p251 = por %p249, %p250
      %p252 = scmp.ne.s32.totalorder %s244, %s247
      %p253 = scmp.eq.s32.totalorder %s19, 0
      %p254 = por %p252, %p253
      %p255 = scmp.ne.s32.totalorder %s244, %s247
      %p256 = scmp.eq.s32.totalorder %s24, 3
      %p257 = por %p255, %p256
      %p258 = scmp.ne.s32.totalorder %s247, %s248
      %p259 = scmp.eq.s32.totalorder %s24, 0
      %p260 = por %p258, %p259
      %p261 = scmp.ne.s32.totalorder %s247, %s248
      %p262 = scmp.eq.s32.totalorder %s25, 3
      %p263 = por %p261, %p262
      %p265 = scmp.ne.s32.totalorder %s248, %s264
      %p266 = scmp.eq.s32.totalorder %s25, 0
      %p267 = por %p265, %p266
      %s268 = ssub.s32 %s26, %s38
      %p269 = scmp.eq.s32.totalorder %s268, 0
      %s271 = sadd.s32 %s270, 1
      %s272 = scalar_select %p269, %s270, %s271
      %p275 = pneg %p269
      %p276 = scmp.eq.s32.totalorder %s19, 3
      %p277 = por %p275, %p276
      %p278 = scmp.ne.s32.totalorder %s270, %s273
      %p279 = scmp.eq.s32.totalorder %s19, 0
      %p280 = por %p278, %p279
      %p281 = scmp.ne.s32.totalorder %s270, %s273
      %p282 = scmp.eq.s32.totalorder %s24, 3
      %p283 = por %p281, %p282
      %p284 = scmp.ne.s32.totalorder %s273, %s274
      %p285 = scmp.eq.s32.totalorder %s24, 0
      %p286 = por %p284, %p285
      %p287 = scmp.ne.s32.totalorder %s273, %s274
      %p288 = scmp.eq.s32.totalorder %s25, 3
      %p289 = por %p287, %p288
      %p291 = scmp.ne.s32.totalorder %s274, %s290
      %p292 = scmp.eq.s32.totalorder %s25, 0
      %p293 = por %p291, %p292
      %s295 = sadd.s32 %s294, 1
      %p298 = scmp.eq.s32.totalorder %s19, 3
      %p299 = scmp.ne.s32.totalorder %s294, %s296
      %p300 = scmp.eq.s32.totalorder %s19, 0
      %p301 = por %p299, %p300
      %p302 = scmp.ne.s32.totalorder %s294, %s296
      %p303 = scmp.eq.s32.totalorder %s24, 3
      %p304 = por %p302, %p303
      %p305 = scmp.ne.s32.totalorder %s296, %s297
      %p306 = scmp.eq.s32.totalorder %s24, 0
      %p307 = por %p305, %p306
      %p308 = scmp.ne.s32.totalorder %s296, %s297
      %p309 = scmp.eq.s32.totalorder %s25, 3
      %p310 = por %p308, %p309
      %p312 = scmp.ne.s32.totalorder %s297, %s311
      %p313 = scmp.eq.s32.totalorder %s25, 0
      %p314 = por %p312, %p313
      %s316 = sadd.s32 %s315, 1
      %p319 = scmp.eq.s32.totalorder %s19, 3
      %p320 = scmp.ne.s32.totalorder %s315, %s317
      %p321 = scmp.eq.s32.totalorder %s19, 0
      %p322 = por %p320, %p321
      %p323 = scmp.ne.s32.totalorder %s315, %s317
      %p324 = scmp.eq.s32.totalorder %s24, 3
      %p325 = por %p323, %p324
      %p326 = scmp.ne.s32.totalorder %s317, %s318
      %p327 = scmp.eq.s32.totalorder %s24, 0
      %p328 = por %p326, %p327
      %p329 = scmp.ne.s32.totalorder %s317, %s318
      %p330 = scmp.eq.s32.totalorder %s25, 3
      %p331 = por %p329, %p330
      %p333 = scmp.ne.s32.totalorder %s318, %s332
      %p334 = scmp.eq.s32.totalorder %s25, 0
      %p335 = por %p333, %p334
      %s337 = sadd.s32 %s336, 1
      %p340 = scmp.eq.s32.totalorder %s19, 3
      %p341 = scmp.ne.s32.totalorder %s336, %s338
      %p342 = scmp.eq.s32.totalorder %s19, 0
      %p343 = por %p341, %p342
      %p344 = scmp.ne.s32.totalorder %s336, %s338
      %p345 = scmp.eq.s32.totalorder %s24, 3
      %p346 = por %p344, %p345
      %p347 = scmp.ne.s32.totalorder %s338, %s339
      %p348 = scmp.eq.s32.totalorder %s24, 0
      %p349 = por %p347, %p348
      %p350 = scmp.ne.s32.totalorder %s338, %s339
      %p351 = scmp.eq.s32.totalorder %s25, 3
      %p352 = por %p350, %p351
      %p354 = scmp.ne.s32.totalorder %s339, %s353
      %p355 = scmp.eq.s32.totalorder %s25, 0
      %p356 = por %p354, %p355
      %p357 = scmp.le.s32.totalorder 1, %s19
      %p358 = scmp.lt.s32.totalorder %s19, 5
      %p359 = pnand %p357, %p358
      %p360 = pneg %p359
      // Predicated region
      $region9: #{nbert_forward.1} parent=5 // pred_check
        _
      $region10: #{nbert_forward.1} parent=5 // pred_check_branch
        %362 = sbr.rel (%p359) target = $region12
      $region11: #{nbert_forward.1} parent=5 // pred_region
        %s363 = ssub.s32 %s19, 1
        // Predicated region
        $region13: #{nbert_forward.1} parent=11 // pred_check
          %p364 = pneg %p52
        $region14: #{nbert_forward.1} parent=11 // pred_check_branch
          %366 = sbr.rel (%p364) target = $region16
        $region15: #{nbert_forward.1} parent=11 // pred_region
          _
        $region16: #{nbert_forward.1} parent=11 // pred_fallthru
          _
        // Predicated region
        $region17: #{nbert_forward.1} parent=11 // pred_check
          %p367 = pneg %p73
        $region18: #{nbert_forward.1} parent=11 // pred_check_branch
          %369 = sbr.rel (%p367) target = $region20
        $region19: #{nbert_forward.1} parent=11 // pred_region
          _
        $region20: #{nbert_forward.1} parent=11 // pred_fallthru
          _
        // Predicated region
        $region21: #{nbert_forward.1} parent=11 // pred_check
          %p370 = pneg %p94
        $region22: #{nbert_forward.1} parent=11 // pred_check_branch
          %372 = sbr.rel (%p370) target = $region24
        $region23: #{nbert_forward.1} parent=11 // pred_region
          _
        $region24: #{nbert_forward.1} parent=11 // pred_fallthru
          _
        // Predicated region
        $region25: #{nbert_forward.1} parent=11 // pred_check
          %p373 = pneg %p307
        $region26: #{nbert_forward.1} parent=11 // pred_check_branch
          %375 = sbr.rel (%p373) target = $region28
        $region27: #{nbert_forward.1} parent=11 // pred_region
          _
        $region28: #{nbert_forward.1} parent=11 // pred_fallthru
          _
        // Predicated region
        $region29: #{nbert_forward.1} parent=11 // pred_check
          %p376 = pneg %p328
        $region30: #{nbert_forward.1} parent=11 // pred_check_branch
          %378 = sbr.rel (%p376) target = $region32
        $region31: #{nbert_forward.1} parent=11 // pred_region
          _
        $region32: #{nbert_forward.1} parent=11 // pred_fallthru
          _
      $region12: #{nbert_forward.1} parent=5 // pred_fallthru
        _
      %p379 = scmp.lt.s32.totalorder %s19, 4
      // Predicated region
      $region33: #{nbert_forward.1} parent=5 // pred_check
        %p380 = pneg %p379
      $region34: #{nbert_forward.1} parent=5 // pred_check_branch
        %382 = sbr.rel (%p380) target = $region36
      $region35: #{nbert_forward.1} parent=5 // pred_region
        // Predicated region
        $region37: #{nbert_forward.1} parent=35 // pred_check
          %p383 = pneg %p116
        $region38: #{nbert_forward.1} parent=35 // pred_check_branch
          %385 = sbr.rel (%p383) target = $region40
        $region39: #{nbert_forward.1} parent=35 // pred_region
          %p386 = scmp.lt.s32.totalorder %s26, 1
          %s387 = scalar_select %p386, %s26, 1
          %p388 = scmp.lt.s32.totalorder %s27, 1
          %s389 = scalar_select %p388, %s27, 1
          %s390 = smul.addr %s389, 4
          %s391 = smul.addr %s387, 8
          %s392 = sadd.s32 %s390, %s391
          %s393 = smul.addr %s392, 4
          %s394 = scalar_lea.vmem %s3, %s393
        $region40: #{nbert_forward.1} parent=35 // pred_fallthru
          _
        // Predicated region
        $region41: #{nbert_forward.1} parent=35 // pred_check
          %p395 = pneg %p144
        $region42: #{nbert_forward.1} parent=35 // pred_check_branch
          %397 = sbr.rel (%p395) target = $region44
        $region43: #{nbert_forward.1} parent=35 // pred_region
          %p398 = scmp.lt.s32.totalorder %s26, 1
          %s399 = scalar_select %p398, %s26, 1
          %p400 = scmp.lt.s32.totalorder %s27, 1
          %s401 = scalar_select %p400, %s27, 1
          %s402 = smul.addr %s401, 4
          %s403 = smul.addr %s399, 8
          %s404 = sadd.s32 %s402, %s403
          %s405 = smul.addr %s404, 4
          %s406 = scalar_lea.vmem %s4, %s405
        $region44: #{nbert_forward.1} parent=35 // pred_fallthru
          _
        // Predicated region
        $region45: #{nbert_forward.1} parent=35 // pred_check
          %p407 = pneg %p172
        $region46: #{nbert_forward.1} parent=35 // pred_check_branch
          %409 = sbr.rel (%p407) target = $region48
        $region47: #{nbert_forward.1} parent=35 // pred_region
          %p410 = scmp.lt.s32.totalorder %s26, 1
          %s411 = scalar_select %p410, %s26, 1
          %p412 = scmp.lt.s32.totalorder %s27, 1
          %s413 = scalar_select %p412, %s27, 1
          %s414 = smul.addr %s413, 4
          %s415 = smul.addr %s411, 8
          %s416 = sadd.s32 %s414, %s415
          %s417 = smul.addr %s416, 4
          %s418 = scalar_lea.vmem %s5, %s417
        $region48: #{nbert_forward.1} parent=35 // pred_fallthru
          _
        // Predicated region
        $region49: #{nbert_forward.1} parent=35 // pred_check
          %p419 = pneg %p200
        $region50: #{nbert_forward.1} parent=35 // pred_check_branch
          %421 = sbr.rel (%p419) target = $region52
        $region51: #{nbert_forward.1} parent=35 // pred_region
          %p422 = scmp.lt.s32.totalorder %s26, 1
          %s423 = scalar_select %p422, %s26, 1
          %p424 = scmp.lt.s32.totalorder %s27, 1
          %s425 = scalar_select %p424, %s27, 1
          %s426 = smul.addr %s425, 8
          %s427 = smul.addr %s423, 16
          %s428 = sadd.s32 %s426, %s427
          %s429 = smul.addr %s428, 4
          %s430 = scalar_lea.vmem %s6, %s429
        $region52: #{nbert_forward.1} parent=35 // pred_fallthru
          _
        // Predicated region
        $region53: #{nbert_forward.1} parent=35 // pred_check
          %p431 = pneg %p228
        $region54: #{nbert_forward.1} parent=35 // pred_check_branch
          %433 = sbr.rel (%p431) target = $region56
        $region55: #{nbert_forward.1} parent=35 // pred_region
          %p434 = scmp.lt.s32.totalorder %s26, 1
          %s435 = scalar_select %p434, %s26, 1
          %p436 = scmp.lt.s32.totalorder %s27, 1
          %s437 = scalar_select %p436, %s27, 1
          %s438 = smul.addr %s435, 2
          %s439 = sadd.s32 %s437, %s438
          %s440 = smul.addr %s439, 8
          %s441 = scalar_lea.vmem %s7, %s440
        $region56: #{nbert_forward.1} parent=35 // pred_fallthru
          _
        // Predicated region
        $region57: #{nbert_forward.1} parent=35 // pred_check
          %p442 = pneg %p254
        $region58: #{nbert_forward.1} parent=35 // pred_check_branch
          %444 = sbr.rel (%p442) target = $region60
        $region59: #{nbert_forward.1} parent=35 // pred_region
          %p445 = scmp.lt.s32.totalorder %s26, 1
          %s446 = scalar_select %p445, %s26, 1
          %s447 = smul.addr %s446, 4
          %s448 = smul.addr %s447, 4
          %s449 = scalar_lea.vmem %s8, %s448
        $region60: #{nbert_forward.1} parent=35 // pred_fallthru
          _
        // Predicated region
        $region61: #{nbert_forward.1} parent=35 // pred_check
          %p450 = pneg %p280
        $region62: #{nbert_forward.1} parent=35 // pred_check_branch
          %452 = sbr.rel (%p450) target = $region64
        $region63: #{nbert_forward.1} parent=35 // pred_region
          %p453 = scmp.lt.s32.totalorder %s26, 1
          %s454 = scalar_select %p453, %s26, 1
          %s455 = scalar_lea.vmem %s9, %s454
        $region64: #{nbert_forward.1} parent=35 // pred_fallthru
          _
      $region36: #{nbert_forward.1} parent=5 // pred_fallthru
        _
      %p456 = scmp.le.s32.totalorder 1, %s19
      %p457 = scmp.lt.s32.totalorder %s19, 5
      %p458 = pnand %p456, %p457
      %p459 = pneg %p458
      // Predicated region
      $region65: #{nbert_forward.1} parent=5 // pred_check
        _
      $region66: #{nbert_forward.1} parent=5 // pred_check_branch
        %461 = sbr.rel (%p458) target = $region68
      $region67: #{nbert_forward.1} parent=5 // pred_region
        %s462 = ssub.s32 %s19, 1
        %p463 = pneg %p52
        %p464 = pneg %p49
        %p465 = pneg %p73
        %p466 = pneg %p70
        %p467 = pneg %p94
        %p468 = pneg %p91
        %p469 = scmp.lt.s32.totalorder %s28, 1
        %s470 = scalar_select %p469, %s28, 1
        %p471 = scmp.lt.s32.totalorder %s29, 1
        %s472 = scalar_select %p471, %s29, 1
        %s473 = smul.addr %s472, 4
        %s474 = smul.addr %s470, 8
        %s475 = sadd.s32 %s473, %s474
        %s476 = smul.addr %s475, 4
        %s477 = scalar_lea.vmem %s3, %s476
        %p478 = pneg %p122
        %p479 = pneg %p119
        %p480 = scmp.lt.s32.totalorder %s28, 1
        %s481 = scalar_select %p480, %s28, 1
        %p482 = scmp.lt.s32.totalorder %s29, 1
        %s483 = scalar_select %p482, %s29, 1
        %s484 = smul.addr %s483, 4
        %s485 = smul.addr %s481, 8
        %s486 = sadd.s32 %s484, %s485
        %s487 = smul.addr %s486, 4
        %s488 = scalar_lea.vmem %s4, %s487
        %p489 = pneg %p150
        %p490 = pneg %p147
        %p491 = scmp.lt.s32.totalorder %s28, 1
        %s492 = scalar_select %p491, %s28, 1
        %p493 = scmp.lt.s32.totalorder %s29, 1
        %s494 = scalar_select %p493, %s29, 1
        %s495 = smul.addr %s494, 4
        %s496 = smul.addr %s492, 8
        %s497 = sadd.s32 %s495, %s496
        %s498 = smul.addr %s497, 4
        %s499 = scalar_lea.vmem %s5, %s498
        %p500 = pneg %p178
        %p501 = pneg %p175
        %p502 = scmp.lt.s32.totalorder %s28, 1
        %s503 = scalar_select %p502, %s28, 1
        %p504 = scmp.lt.s32.totalorder %s29, 1
        %s505 = scalar_select %p504, %s29, 1
        %s506 = smul.addr %s505, 8
        %s507 = smul.addr %s503, 16
        %s508 = sadd.s32 %s506, %s507
        %s509 = smul.addr %s508, 4
        %s510 = scalar_lea.vmem %s6, %s509
        %p511 = pneg %p206
        %p512 = pneg %p203
        %p513 = scmp.lt.s32.totalorder %s28, 1
        %s514 = scalar_select %p513, %s28, 1
        %p515 = scmp.lt.s32.totalorder %s29, 1
        %s516 = scalar_select %p515, %s29, 1
        %s517 = smul.addr %s514, 2
        %s518 = sadd.s32 %s516, %s517
        %s519 = smul.addr %s518, 8
        %s520 = scalar_lea.vmem %s7, %s519
        %p521 = pneg %p234
        %p522 = pneg %p231
        %p523 = scmp.lt.s32.totalorder %s28, 1
        %s524 = scalar_select %p523, %s28, 1
        %s525 = smul.addr %s524, 4
        %s526 = smul.addr %s525, 4
        %s527 = scalar_lea.vmem %s8, %s526
        %p528 = pneg %p260
        %p529 = pneg %p257
        %p530 = scmp.lt.s32.totalorder %s28, 1
        %s531 = scalar_select %p530, %s28, 1
        %s532 = scalar_lea.vmem %s9, %s531
        %p533 = pneg %p286
        %p534 = pneg %p283
        %p535 = pneg %p307
        %p536 = pneg %p304
        %p537 = pneg %p328
        %p538 = pneg %p325
        %p539 = pneg %p349
        %p540 = pneg %p346
        %p541 = scmp.lt.s32.totalorder %s28, 1
        %s542 = scalar_select %p541, %s28, 1
        %p543 = scmp.lt.s32.totalorder %s29, 1
        %s544 = scalar_select %p543, %s29, 1
        %s545 = smul.addr %s544, 4
        %s546 = smul.addr %s542, 8
        %s547 = sadd.s32 %s545, %s546
        %s548 = smul.addr %s547, 4
        %s549 = scalar_lea.vmem %s3, %s548
        %p550 = scmp.lt.s32.totalorder %s28, 1
        %s551 = scalar_select %p550, %s28, 1
        %p552 = scmp.lt.s32.totalorder %s29, 1
        %s553 = scalar_select %p552, %s29, 1
        %s554 = smul.addr %s553, 4
        %s555 = smul.addr %s551, 8
        %s556 = sadd.s32 %s554, %s555
        %s557 = smul.addr %s556, 4
        %s558 = scalar_lea.vmem %s4, %s557
        %p559 = scmp.lt.s32.totalorder %s28, 1
        %s560 = scalar_select %p559, %s28, 1
        %p561 = scmp.lt.s32.totalorder %s29, 1
        %s562 = scalar_select %p561, %s29, 1
        %s563 = smul.addr %s562, 4
        %s564 = smul.addr %s560, 8
        %s565 = sadd.s32 %s563, %s564
        %s566 = smul.addr %s565, 4
        %s567 = scalar_lea.vmem %s5, %s566
        %p568 = scmp.lt.s32.totalorder %s28, 1
        %s569 = scalar_select %p568, %s28, 1
        %p570 = scmp.lt.s32.totalorder %s29, 1
        %s571 = scalar_select %p570, %s29, 1
        %s572 = smul.addr %s571, 8
        %s573 = smul.addr %s569, 16
        %s574 = sadd.s32 %s572, %s573
        %s575 = smul.addr %s574, 4
        %s576 = scalar_lea.vmem %s6, %s575
        %p577 = scmp.lt.s32.totalorder %s28, 1
        %s578 = scalar_select %p577, %s28, 1
        %p579 = scmp.lt.s32.totalorder %s29, 1
        %s580 = scalar_select %p579, %s29, 1
        %s581 = smul.addr %s578, 2
        %s582 = sadd.s32 %s580, %s581
        %s583 = smul.addr %s582, 8
        %s584 = scalar_lea.vmem %s7, %s583
        %p585 = scmp.lt.s32.totalorder %s28, 1
        %s586 = scalar_select %p585, %s28, 1
        %s587 = smul.addr %s586, 4
        %s588 = smul.addr %s587, 4
        %s589 = scalar_lea.vmem %s8, %s588
        %p590 = scmp.lt.s32.totalorder %s28, 1
        %s591 = scalar_select %p590, %s28, 1
        %s592 = scalar_lea.vmem %s9, %s591
        %p594 = scmp.eq.s32.totalorder %s29, 0
        // Predicated region
        $region69: #{nbert_forward.1} parent=67 // pred_check
          %p595 = pneg %p594
        $region70: #{nbert_forward.1} parent=67 // pred_check_branch
          %597 = sbr.rel (%p595) target = $region72
        $region71: #{nbert_forward.1} parent=67 // pred_region
          %v598 = vld [vmem:[%s2] sm:$0x3]
          %v599 = vld [vmem:[%s0] sm:$0xff]
          %v600 = vld [vmem:[%s0 + $0x8] sm:$0xff]
          %vm601 = vcmask 261120
          %v602 = vsel %vm601, %v599, 0.0
          %603 = vadd.xlane.f32.xlu0 %v602
          %v604 = vpop.xlane.xlu0 %603
          %v605 = vsel %vm601, %v600, 0.0
          %606 = vadd.xlane.f32.xlu0 %v605
          %v607 = vpop.xlane.xlu0 %606
          %v608 = vrcp.pop 32.0
          %v609 = vmul.f32 %v604, %v608
          %v610 = vmul.f32 %v607, %v608
          %v611 = vsub.f32 %v599, %v609
          %v612 = vsub.f32 %v600, %v610
          %v613 = vmul.f32 %v611, %v611
          %v614 = vmul.f32 %v612, %v612
          %v615 = vsel %vm601, %v613, 0.0
          %616 = vadd.xlane.f32.xlu0 %v615
          %v617 = vpop.xlane.xlu0 %616
          %v618 = vsel %vm601, %v614, 0.0
          %619 = vadd.xlane.f32.xlu0 %v618
          %v620 = vpop.xlane.xlu0 %619
          %v621 = vmul.f32 %v617, %v608
          %v622 = vmul.f32 %v620, %v608
          %v623 = vadd.f32 %v621, 1e-12
          %v624 = vadd.f32 %v622, 1e-12
          %v625 = vrsqrt.pop %v623
          %v626 = vrsqrt.pop %v624
          %v627 = vmul.f32 %v611, %v625
          %v628 = vmul.f32 %v612, %v626
          %v629 = vlaneseq
          %v630 = vshrl.u32 %v629, 7
          %v631 = vsub.s32 0, %v630
          %v632 = vrot.slane %v598, %v631
          %v633 = vmul.f32 %v627, %v632
          %v634 = vmul.f32 %v628, %v632
          %v635 = vlaneseq
          %v636 = vshrl.u32 %v635, 7
          %v637 = vsub.s32 1, %v636
          %v638 = vrot.slane %v598, %v637
          %v639 = vadd.f32 %v633, %v638
          %v640 = vadd.f32 %v634, %v638
          %641 = vst.msk [vmem:[#allocation2] sm:$0xff] %vm601, %v639
          %642 = vst.msk [vmem:[#allocation2 + $0x8] sm:$0xff] %vm601, %v640
        $region72: #{nbert_forward.1} parent=67 // pred_fallthru
          _
        %v643 = vld [vmem:[#allocation2] sm:$0xff]
        %v644 = vld [vmem:[#allocation2 + $0x8] sm:$0xff]
        %v645 = vld [vmem:[%s1] sm:$0x3]
        %v646 = vld [vmem:[%s584] sm:$0xff]
        %v647 = vld [vmem:[%s549] sm:$0xf]
        %v648 = vld [vmem:[%s549 + $0x4] sm:$0xf]
        %v649 = vld [vmem:[%s549 + $0x8] sm:$0xf]
        %v650 = vld [vmem:[%s549 + $0xc] sm:$0xf]
        %v651 = vpack.c.bf16 %v644, %v643
        %v652 = vlaneseq
        %v653 = vshrl.u32 %v652, 7
        %v654 = vsub.s32 0, %v653
        %v655 = vrot.slane %v646, %v654
        %v660 = vunpack.c.l.b16 %v647
        %v661 = vunpack.c.l.b16 %v648
        %v662 = vunpack.c.l.b16 %v649
        %v663 = vunpack.c.l.b16 %v650
        %v664 = vpack.c.b16 %v661, %v660
        %v665 = vpack.c.b16 %v663, %v662
        %vm668 = vcmask 261120
        %v670 = vsel %vm668, %v651, 0
        %672 = vmatprep.subr.bf16.mxu0 0
        %673 = vmatpush1.bf16.msra.mxu0 0
        %674 = vmatprep.subr.bf16.mxu0 0
        %675 = vmatpush1.bf16.msra.mxu0 0
        %676 = vmatprep.subr.bf16.mxu0 0
        %677 = vmatpush1.bf16.msra.mxu0 0
        %678 = vmatprep.subr.bf16.mxu0 0
        %679 = vmatpush1.bf16.msra.mxu0 0
        %680 = vmatprep.subr.bf16.mxu0 0
        %681 = vmatpush1.bf16.msra.mxu0 0
        %682 = vmatprep.subr.bf16.mxu0 0
        %683 = vmatpush1.bf16.msra.mxu0 0
        %684 = vmatprep.subr.bf16.mxu0 0
        %685 = vmatpush1.bf16.msra.mxu0 %v665
        %686 = vmatprep.subr.bf16.mxu0 0
        %687 = vmatpush1.bf16.msra.mxu0 %v664
        %688 = vmatprep.subr.bf16.mxu0 0
        %689 = vmatpush2.bf16.msra.mxu0 0
        %690 = vmatprep.subr.bf16.mxu0 0
        %691 = vmatpush2.bf16.msra.mxu0 0
        %692 = vmatprep.subr.bf16.mxu0 0
        %693 = vmatpush2.bf16.msra.mxu0 0
        %694 = vmatprep.subr.bf16.mxu0 0
        %695 = vmatpush2.bf16.msra.mxu0 0
        %696 = vmatprep.subr.bf16.mxu0 0
        %697 = vmatpush2.bf16.msra.mxu0 0
        %698 = vmatprep.subr.bf16.mxu0 0
        %699 = vmatpush2.bf16.msra.mxu0 0
        %700 = vmatprep.subr.bf16.mxu0 0
        %701 = vmatpush2.bf16.msra.mxu0 0
        %702 = vmatprep.subr.bf16.mxu0 0
        %703 = vmatpush2.bf16.msra.mxu0 0
        %704 = vmatprep.mubr.bf16.mxu0 0
        %705 = vmatmul.mubr.bf16.gmra.mxu0 %v670
        %v706 = vpop.f32.mrf.mxu0
        %v707 = vadd.f32 %v655, %v706
        %v708 = vpop.f32.mrf.mxu0
        %v709 = vpop.f32.mrf.mxu0
        %v710 = vadd.f32 %v655, %v709
        %v711 = vpop.f32.mrf.mxu0
        %712 = vdwg.mxu0
        %v713 = vmul.f32 %v707, 0.35355338
        %v714 = vmul.f32 %v710, 0.35355338
        %v717 = vunpack.c.l.s4 1966171168
        %v718 = vunpack.c.0.s8 %v717
        %v719 = vlaneseq
        %v720 = vshrl.u32 %v719, 7
        %v721 = vsub.s32 %v718, %v720
        %v722 = vrot.slane %v645, %v721
        %v723 = vcombine.high %v722, %v722
        %v725 = vunpack.c.l.s4 1966171168
        %v726 = vunpack.c.0.s8 %v725
        %v727 = vlaneseq
        %v728 = vshrl.u32 %v727, 7
        %v729 = vsub.s32 %v726, %v728
        %v730 = vrot.slane %v722, %v729
        %v732 = vunpack.c.l.s4 1966171168
        %v733 = vunpack.c.0.s8 %v732
        %v734 = vlaneseq
        %v735 = vshrl.u32 %v734, 7
        %v736 = vsub.s32 %v733, %v735
        %v737 = vrot.slane %v723, %v736
        %v738 = vpack.c.bf16 %v713, %v713
        %v739 = vpack.c.bf16 %v714, %v714
        %v740 = vpack.c.bf16 %v707, %v707
        %v741 = vpack.c.bf16 %v710, %v710
        %v742 = vlaneseq
        %v743 = vshrl.u32 %v742, 7
        %v744 = vsub.s32 0, %v743
        %v745 = vrot.slane %v730, %v744
        %v746 = vlaneseq
        %v747 = vshrl.u32 %v746, 7
        %v748 = vsub.s32 0, %v747
        %v749 = vrot.slane %v737, %v748
        %753 = vrot.lane.b32.xlu0 %v740, 96
        %v754 = vpop.permute.xlu0 %753
        %vm755 = vcmask 64512
        %v757 = vsel %vm755, %v738, 0
        %v760 = vsel %vm755, %v754, 0
        %762 = vmatprep.subr.bf16.mxu0 0
        %763 = vmatpush1.bf16.xpose.msra.mxu0 0
        %764 = vmatprep.subr.bf16.mxu0 0
        %765 = vmatpush1.bf16.xpose.msra.mxu0 0
        %766 = vmatprep.subr.bf16.mxu0 0
        %767 = vmatpush1.bf16.xpose.msra.mxu0 0
        %768 = vmatprep.subr.bf16.mxu0 0
        %769 = vmatpush1.bf16.xpose.msra.mxu0 0
        %770 = vmatprep.subr.bf16.mxu0 0
        %771 = vmatpush1.bf16.xpose.msra.mxu0 0
        %772 = vmatprep.subr.bf16.mxu0 0
        %773 = vmatpush1.bf16.xpose.msra.mxu0 0
        %774 = vmatprep.subr.bf16.mxu0 0
        %775 = vmatpush1.bf16.xpose.msra.mxu0 0
        %776 = vmatprep.subr.bf16.mxu0 0
        %777 = vmatpush1.bf16.xpose.msra.mxu0 %v760
        %778 = vmatprep.subr.bf16.mxu0 0
        %779 = vmatpush2.bf16.xpose.msra.mxu0 0
        %780 = vmatprep.subr.bf16.mxu0 0
        %781 = vmatpush2.bf16.xpose.msra.mxu0 0
        %782 = vmatprep.subr.bf16.mxu0 0
        %783 = vmatpush2.bf16.xpose.msra.mxu0 0
        %784 = vmatprep.subr.bf16.mxu0 0
        %785 = vmatpush2.bf16.xpose.msra.mxu0 0
        %786 = vmatprep.subr.bf16.mxu0 0
        %787 = vmatpush2.bf16.xpose.msra.mxu0 0
        %788 = vmatprep.subr.bf16.mxu0 0
        %789 = vmatpush2.bf16.xpose.msra.mxu0 0
        %790 = vmatprep.subr.bf16.mxu0 0
        %791 = vmatpush2.bf16.xpose.msra.mxu0 0
        %792 = vmatprep.subr.bf16.mxu0 0
        %793 = vmatpush2.bf16.xpose.msra.mxu0 0
        %794 = vmatprep.mubr.bf16.mxu0 0
        %795 = vmatmul.mubr.bf16.gmra.mxu0 %v757
        %v796 = vpop.f32.mrf.mxu0
        %v797 = vadd.f32 %v745, %v796
        %v798 = vpop.f32.mrf.mxu0
        %v799 = vpop.f32.mrf.mxu0
        %v800 = vpop.f32.mrf.mxu0
        %801 = vdwg.mxu0
        %803 = vrot.lane.b32.xlu0 %v741, 96
        %v804 = vpop.permute.xlu0 %803
        %v806 = vsel %vm755, %v739, 0
        %v809 = vsel %vm755, %v804, 0
        %811 = vmatprep.subr.bf16.mxu0 0
        %812 = vmatpush1.bf16.xpose.msra.mxu0 0
        %813 = vmatprep.subr.bf16.mxu0 0
        %814 = vmatpush1.bf16.xpose.msra.mxu0 0
        %815 = vmatprep.subr.bf16.mxu0 0
        %816 = vmatpush1.bf16.xpose.msra.mxu0 0
        %817 = vmatprep.subr.bf16.mxu0 0
        %818 = vmatpush1.bf16.xpose.msra.mxu0 0
        %819 = vmatprep.subr.bf16.mxu0 0
        %820 = vmatpush1.bf16.xpose.msra.mxu0 0
        %821 = vmatprep.subr.bf16.mxu0 0
        %822 = vmatpush1.bf16.xpose.msra.mxu0 0
        %823 = vmatprep.subr.bf16.mxu0 0
        %824 = vmatpush1.bf16.xpose.msra.mxu0 0
        %825 = vmatprep.subr.bf16.mxu0 0
        %826 = vmatpush1.bf16.xpose.msra.mxu0 %v809
        %827 = vmatprep.subr.bf16.mxu0 0
        %828 = vmatpush2.bf16.xpose.msra.mxu0 0
        %829 = vmatprep.subr.bf16.mxu0 0
        %830 = vmatpush2.bf16.xpose.msra.mxu0 0
        %831 = vmatprep.subr.bf16.mxu0 0
        %832 = vmatpush2.bf16.xpose.msra.mxu0 0
        %833 = vmatprep.subr.bf16.mxu0 0
        %834 = vmatpush2.bf16.xpose.msra.mxu0 0
        %835 = vmatprep.subr.bf16.mxu0 0
        %836 = vmatpush2.bf16.xpose.msra.mxu0 0
        %837 = vmatprep.subr.bf16.mxu0 0
        %838 = vmatpush2.bf16.xpose.msra.mxu0 0
        %839 = vmatprep.subr.bf16.mxu0 0
        %840 = vmatpush2.bf16.xpose.msra.mxu0 0
        %841 = vmatprep.subr.bf16.mxu0 0
        %842 = vmatpush2.bf16.xpose.msra.mxu0 0
        %843 = vmatprep.mubr.bf16.mxu0 0
        %844 = vmatmul.mubr.bf16.gmra.mxu0 %v806
        %v845 = vpop.f32.mrf.mxu0
        %v846 = vadd.f32 %v749, %v845
        %v847 = vpop.f32.mrf.mxu0
        %v848 = vpop.f32.mrf.mxu0
        %v849 = vpop.f32.mrf.mxu0
        %850 = vdwg.mxu0
        %v851 = vsel %vm755, %v797, -inf
        %852 = vmax.xlane.f32.xlu0 %v851
        %v853 = vpop.xlane.xlu0 %852
        %v854 = vsel %vm755, %v846, -inf
        %855 = vmax.xlane.f32.xlu0 %v854
        %v856 = vpop.xlane.xlu0 %855
        %v857 = vsub.f32 %v797, %v853
        %v858 = vsub.f32 %v846, %v856
        %v859 = vmul.f32 %v857, 1.442695
        %v860 = vpow.pop %v859
        %v861 = vmul.f32 %v858, 1.442695
        %v862 = vpow.pop %v861
        %v863 = vsel %vm755, %v860, 0.0
        %864 = vadd.xlane.f32.xlu0 %v863
        %v865 = vpop.xlane.xlu0 %864
        %v866 = vsel %vm755, %v862, 0.0
        %867 = vadd.xlane.f32.xlu0 %v866
        %v868 = vpop.xlane.xlu0 %867
        %v869 = vrcp.pop %v865
        %v870 = vrcp.pop %v868
        %v871 = vmul.f32 %v860, %v869
        %v872 = vmul.f32 %v862, %v870
        %v873 = vpack.c.bf16 %v871, %v871
        %v874 = vpack.c.bf16 %v872, %v872
        %875 = vrot.lane.b32.xlu0 %v740, 64
        %v876 = vpop.permute.xlu0 %875
        %v878 = vsel %vm755, %v873, 0
        %vm880 = vcmask 1043456
        %v882 = vsel %vm880, %v876, 0
        %884 = vmatprep.subr.bf16.mxu0 0
        %885 = vmatpush1.bf16.msra.mxu0 0
        %886 = vmatprep.subr.bf16.mxu0 0
        %887 = vmatpush1.bf16.msra.mxu0 0
        %888 = vmatprep.subr.bf16.mxu0 0
        %889 = vmatpush1.bf16.msra.mxu0 0
        %890 = vmatprep.subr.bf16.mxu0 0
        %891 = vmatpush1.bf16.msra.mxu0 0
        %892 = vmatprep.subr.bf16.mxu0 0
        %893 = vmatpush1.bf16.msra.mxu0 0
        %894 = vmatprep.subr.bf16.mxu0 0
        %895 = vmatpush1.bf16.msra.mxu0 0
        %896 = vmatprep.subr.bf16.mxu0 0
        %897 = vmatpush1.bf16.msra.mxu0 0
        %898 = vmatprep.subr.bf16.mxu0 0
        %899 = vmatpush1.bf16.msra.mxu0 %v882
        %900 = vmatprep.subr.bf16.mxu0 0
        %901 = vmatpush2.bf16.msra.mxu0 0
        %902 = vmatprep.subr.bf16.mxu0 0
        %903 = vmatpush2.bf16.msra.mxu0 0
        %904 = vmatprep.subr.bf16.mxu0 0
        %905 = vmatpush2.bf16.msra.mxu0 0
        %906 = vmatprep.subr.bf16.mxu0 0
        %907 = vmatpush2.bf16.msra.mxu0 0
        %908 = vmatprep.subr.bf16.mxu0 0
        %909 = vmatpush2.bf16.msra.mxu0 0
        %910 = vmatprep.subr.bf16.mxu0 0
        %911 = vmatpush2.bf16.msra.mxu0 0
        %912 = vmatprep.subr.bf16.mxu0 0
        %913 = vmatpush2.bf16.msra.mxu0 0
        %914 = vmatprep.subr.bf16.mxu0 0
        %915 = vmatpush2.bf16.msra.mxu0 0
        %916 = vmatprep.mubr.bf16.mxu0 0
        %917 = vmatmul.mubr.bf16.gmra.mxu0 %v878
        %v918 = vpop.f32.mrf.mxu0
        %v919 = vadd.f32 0.0, %v918
        %v920 = vpop.f32.mrf.mxu0
        %v921 = vpop.f32.mrf.mxu0
        %v922 = vpop.f32.mrf.mxu0
        %923 = vdwg.mxu0
        %924 = vrot.lane.b32.xlu0 %v741, 64
        %v925 = vpop.permute.xlu0 %924
        %v927 = vsel %vm755, %v874, 0
        %v930 = vsel %vm880, %v925, 0
        %932 = vmatprep.subr.bf16.mxu0 0
        %933 = vmatpush1.bf16.msra.mxu0 0
        %934 = vmatprep.subr.bf16.mxu0 0
        %935 = vmatpush1.bf16.msra.mxu0 0
        %936 = vmatprep.subr.bf16.mxu0 0
        %937 = vmatpush1.bf16.msra.mxu0 0
        %938 = vmatprep.subr.bf16.mxu0 0
        %939 = vmatpush1.bf16.msra.mxu0 0
        %940 = vmatprep.subr.bf16.mxu0 0
        %941 = vmatpush1.bf16.msra.mxu0 0
        %942 = vmatprep.subr.bf16.mxu0 0
        %943 = vmatpush1.bf16.msra.mxu0 0
        %944 = vmatprep.subr.bf16.mxu0 0
        %945 = vmatpush1.bf16.msra.mxu0 0
        %946 = vmatprep.subr.bf16.mxu0 0
        %947 = vmatpush1.bf16.msra.mxu0 %v930
        %948 = vmatprep.subr.bf16.mxu0 0
        %949 = vmatpush2.bf16.msra.mxu0 0
        %950 = vmatprep.subr.bf16.mxu0 0
        %951 = vmatpush2.bf16.msra.mxu0 0
        %952 = vmatprep.subr.bf16.mxu0 0
        %953 = vmatpush2.bf16.msra.mxu0 0
        %954 = vmatprep.subr.bf16.mxu0 0
        %955 = vmatpush2.bf16.msra.mxu0 0
        %956 = vmatprep.subr.bf16.mxu0 0
        %957 = vmatpush2.bf16.msra.mxu0 0
        %958 = vmatprep.subr.bf16.mxu0 0
        %959 = vmatpush2.bf16.msra.mxu0 0
        %960 = vmatprep.subr.bf16.mxu0 0
        %961 = vmatpush2.bf16.msra.mxu0 0
        %962 = vmatprep.subr.bf16.mxu0 0
        %963 = vmatpush2.bf16.msra.mxu0 0
        %964 = vmatprep.mubr.bf16.mxu0 0
        %965 = vmatmul.mubr.bf16.gmra.mxu0 %v927
        %v966 = vpop.f32.mrf.mxu0
        %v967 = vadd.f32 0.0, %v966
        %v968 = vpop.f32.mrf.mxu0
        %v969 = vpop.f32.mrf.mxu0
        %v970 = vpop.f32.mrf.mxu0
        %971 = vdwg.mxu0
        %973 = vrot.lane.b32.xlu0 %v738, 120
        %v974 = vpop.permute.xlu0 %973
        %975 = vrot.lane.b32.xlu0 %v740, 88
        %v976 = vpop.permute.xlu0 %975
        %v978 = vsel %vm755, %v974, 0
        %v981 = vsel %vm755, %v976, 0
        %983 = vmatprep.subr.bf16.mxu0 0
        %984 = vmatpush1.bf16.xpose.msra.mxu0 0
        %985 = vmatprep.subr.bf16.mxu0 0
        %986 = vmatpush1.bf16.xpose.msra.mxu0 0
        %987 = vmatprep.subr.bf16.mxu0 0
        %988 = vmatpush1.bf16.xpose.msra.mxu0 0
        %989 = vmatprep.subr.bf16.mxu0 0
        %990 = vmatpush1.bf16.xpose.msra.mxu0 0
        %991 = vmatprep.subr.bf16.mxu0 0
        %992 = vmatpush1.bf16.xpose.msra.mxu0 0
        %993 = vmatprep.subr.bf16.mxu0 0
        %994 = vmatpush1.bf16.xpose.msra.mxu0 0
        %995 = vmatprep.subr.bf16.mxu0 0
        %996 = vmatpush1.bf16.xpose.msra.mxu0 0
        %997 = vmatprep.subr.bf16.mxu0 0
        %998 = vmatpush1.bf16.xpose.msra.mxu0 %v981
        %999 = vmatprep.subr.bf16.mxu0 0
        %1000 = vmatpush2.bf16.xpose.msra.mxu0 0
        %1001 = vmatprep.subr.bf16.mxu0 0
        %1002 = vmatpush2.bf16.xpose.msra.mxu0 0
        %1003 = vmatprep.subr.bf16.mxu0 0
        %1004 = vmatpush2.bf16.xpose.msra.mxu0 0
        %1005 = vmatprep.subr.bf16.mxu0 0
        %1006 = vmatpush2.bf16.xpose.msra.mxu0 0
        %1007 = vmatprep.subr.bf16.mxu0 0
        %1008 = vmatpush2.bf16.xpose.msra.mxu0 0
        %1009 = vmatprep.subr.bf16.mxu0 0
        %1010 = vmatpush2.bf16.xpose.msra.mxu0 0
        %1011 = vmatprep.subr.bf16.mxu0 0
        %1012 = vmatpush2.bf16.xpose.msra.mxu0 0
        %1013 = vmatprep.subr.bf16.mxu0 0
        %1014 = vmatpush2.bf16.xpose.msra.mxu0 0
        %1015 = vmatprep.mubr.bf16.mxu0 0
        %1016 = vmatmul.mubr.bf16.gmra.mxu0 %v978
        %v1017 = vpop.f32.mrf.mxu0
        %v1018 = vadd.f32 %v745, %v1017
        %v1019 = vpop.f32.mrf.mxu0
        %v1020 = vpop.f32.mrf.mxu0
        %v1021 = vpop.f32.mrf.mxu0
        %1022 = vdwg.mxu0
        %1024 = vrot.lane.b32.xlu0 %v739, 120
        %v1025 = vpop.permute.xlu0 %1024
        %1026 = vrot.lane.b32.xlu0 %v741, 88
        %v1027 = vpop.permute.xlu0 %1026
        %v1029 = vsel %vm755, %v1025, 0
        %v1032 = vsel %vm755, %v1027, 0
        %1034 = vmatprep.subr.bf16.mxu0 0
        %1035 = vmatpush1.bf16.xpose.msra.mxu0 0
        %1036 = vmatprep.subr.bf16.mxu0 0
        %1037 = vmatpush1.bf16.xpose.msra.mxu0 0
        %1038 = vmatprep.subr.bf16.mxu0 0
        %1039 = vmatpush1.bf16.xpose.msra.mxu0 0
        %1040 = vmatprep.subr.bf16.mxu0 0
        %1041 = vmatpush1.bf16.xpose.msra.mxu0 0
        %1042 = vmatprep.subr.bf16.mxu0 0
        %1043 = vmatpush1.bf16.xpose.msra.mxu0 0
        %1044 = vmatprep.subr.bf16.mxu0 0
        %1045 = vmatpush1.bf16.xpose.msra.mxu0 0
        %1046 = vmatprep.subr.bf16.mxu0 0
        %1047 = vmatpush1.bf16.xpose.msra.mxu0 0
        %1048 = vmatprep.subr.bf16.mxu0 0
        %1049 = vmatpush1.bf16.xpose.msra.mxu0 %v1032
        %1050 = vmatprep.subr.bf16.mxu0 0
        %1051 = vmatpush2.bf16.xpose.msra.mxu0 0
        %1052 = vmatprep.subr.bf16.mxu0 0
        %1053 = vmatpush2.bf16.xpose.msra.mxu0 0
        %1054 = vmatprep.subr.bf16.mxu0 0
        %1055 = vmatpush2.bf16.xpose.msra.mxu0 0
        %1056 = vmatprep.subr.bf16.mxu0 0
        %1057 = vmatpush2.bf16.xpose.msra.mxu0 0
        %1058 = vmatprep.subr.bf16.mxu0 0
        %1059 = vmatpush2.bf16.xpose.msra.mxu0 0
        %1060 = vmatprep.subr.bf16.mxu0 0
        %1061 = vmatpush2.bf16.xpose.msra.mxu0 0
        %1062 = vmatprep.subr.bf16.mxu0 0
        %1063 = vmatpush2.bf16.xpose.msra.mxu0 0
        %1064 = vmatprep.subr.bf16.mxu0 0
        %1065 = vmatpush2.bf16.xpose.msra.mxu0 0
        %1066 = vmatprep.mubr.bf16.mxu0 0
        %1067 = vmatmul.mubr.bf16.gmra.mxu0 %v1029
        %v1068 = vpop.f32.mrf.mxu0
        %v1069 = vadd.f32 %v749, %v1068
        %v1070 = vpop.f32.mrf.mxu0
        %v1071 = vpop.f32.mrf.mxu0
        %v1072 = vpop.f32.mrf.mxu0
        %1073 = vdwg.mxu0
        %v1074 = vsel %vm755, %v1018, -inf
        %1075 = vmax.xlane.f32.xlu0 %v1074
        %v1076 = vpop.xlane.xlu0 %1075
        %v1077 = vsel %vm755, %v1069, -inf
        %1078 = vmax.xlane.f32.xlu0 %v1077
        %v1079 = vpop.xlane.xlu0 %1078
        %v1080 = vsub.f32 %v1018, %v1076
        %v1081 = vsub.f32 %v1069, %v1079
        %v1082 = vmul.f32 %v1080, 1.442695
        %v1083 = vpow.pop %v1082
        %v1084 = vmul.f32 %v1081, 1.442695
        %v1085 = vpow.pop %v1084
        %v1086 = vsel %vm755, %v1083, 0.0
        %1087 = vadd.xlane.f32.xlu0 %v1086
        %v1088 = vpop.xlane.xlu0 %1087
        %v1089 = vsel %vm755, %v1085, 0.0
        %1090 = vadd.xlane.f32.xlu0 %v1089
        %v1091 = vpop.xlane.xlu0 %1090
        %v1092 = vrcp.pop %v1088
        %v1093 = vrcp.pop %v1091
        %v1094 = vmul.f32 %v1083, %v1092
        %v1095 = vmul.f32 %v1085, %v1093
        %v1096 = vpack.c.bf16 %v1094, %v1094
        %v1097 = vpack.c.bf16 %v1095, %v1095
        %1098 = vrot.lane.b32.xlu0 %v740, 56
        %v1099 = vpop.permute.xlu0 %1098
        %v1101 = vsel %vm755, %v1096, 0
        %v1104 = vsel %vm880, %v1099, 0
        %1106 = vmatprep.subr.bf16.mxu0 0
        %1107 = vmatpush1.bf16.msra.mxu0 0
        %1108 = vmatprep.subr.bf16.mxu0 0
        %1109 = vmatpush1.bf16.msra.mxu0 0
        %1110 = vmatprep.subr.bf16.mxu0 0
        %1111 = vmatpush1.bf16.msra.mxu0 0
        %1112 = vmatprep.subr.bf16.mxu0 0
        %1113 = vmatpush1.bf16.msra.mxu0 0
        %1114 = vmatprep.subr.bf16.mxu0 0
        %1115 = vmatpush1.bf16.msra.mxu0 0
        %1116 = vmatprep.subr.bf16.mxu0 0
        %1117 = vmatpush1.bf16.msra.mxu0 0
        %1118 = vmatprep.subr.bf16.mxu0 0
        %1119 = vmatpush1.bf16.msra.mxu0 0
        %1120 = vmatprep.subr.bf16.mxu0 0
        %1121 = vmatpush1.bf16.msra.mxu0 %v1104
        %1122 = vmatprep.subr.bf16.mxu0 0
        %1123 = vmatpush2.bf16.msra.mxu0 0
        %1124 = vmatprep.subr.bf16.mxu0 0
        %1125 = vmatpush2.bf16.msra.mxu0 0
        %1126 = vmatprep.subr.bf16.mxu0 0
        %1127 = vmatpush2.bf16.msra.mxu0 0
        %1128 = vmatprep.subr.bf16.mxu0 0
        %1129 = vmatpush2.bf16.msra.mxu0 0
        %1130 = vmatprep.subr.bf16.mxu0 0
        %1131 = vmatpush2.bf16.msra.mxu0 0
        %1132 = vmatprep.subr.bf16.mxu0 0
        %1133 = vmatpush2.bf16.msra.mxu0 0
        %1134 = vmatprep.subr.bf16.mxu0 0
        %1135 = vmatpush2.bf16.msra.mxu0 0
        %1136 = vmatprep.subr.bf16.mxu0 0
        %1137 = vmatpush2.bf16.msra.mxu0 0
        %1138 = vmatprep.mubr.bf16.mxu0 0
        %1139 = vmatmul.mubr.bf16.gmra.mxu0 %v1101
        %v1140 = vpop.f32.mrf.mxu0
        %v1141 = vadd.f32 0.0, %v1140
        %v1142 = vpop.f32.mrf.mxu0
        %v1143 = vpop.f32.mrf.mxu0
        %v1144 = vpop.f32.mrf.mxu0
        %1145 = vdwg.mxu0
        %1146 = vrot.lane.b32.xlu0 %v741, 56
        %v1147 = vpop.permute.xlu0 %1146
        %v1149 = vsel %vm755, %v1097, 0
        %v1152 = vsel %vm880, %v1147, 0
        %1154 = vmatprep.subr.bf16.mxu0 0
        %1155 = vmatpush1.bf16.msra.mxu0 0
        %1156 = vmatprep.subr.bf16.mxu0 0
        %1157 = vmatpush1.bf16.msra.mxu0 0
        %1158 = vmatprep.subr.bf16.mxu0 0
        %1159 = vmatpush1.bf16.msra.mxu0 0
        %1160 = vmatprep.subr.bf16.mxu0 0
        %1161 = vmatpush1.bf16.msra.mxu0 0
        %1162 = vmatprep.subr.bf16.mxu0 0
        %1163 = vmatpush1.bf16.msra.mxu0 0
        %1164 = vmatprep.subr.bf16.mxu0 0
        %1165 = vmatpush1.bf16.msra.mxu0 0
        %1166 = vmatprep.subr.bf16.mxu0 0
        %1167 = vmatpush1.bf16.msra.mxu0 0
        %1168 = vmatprep.subr.bf16.mxu0 0
        %1169 = vmatpush1.bf16.msra.mxu0 %v1152
        %1170 = vmatprep.subr.bf16.mxu0 0
        %1171 = vmatpush2.bf16.msra.mxu0 0
        %1172 = vmatprep.subr.bf16.mxu0 0
        %1173 = vmatpush2.bf16.msra.mxu0 0
        %1174 = vmatprep.subr.bf16.mxu0 0
        %1175 = vmatpush2.bf16.msra.mxu0 0
        %1176 = vmatprep.subr.bf16.mxu0 0
        %1177 = vmatpush2.bf16.msra.mxu0 0
        %1178 = vmatprep.subr.bf16.mxu0 0
        %1179 = vmatpush2.bf16.msra.mxu0 0
        %1180 = vmatprep.subr.bf16.mxu0 0
        %1181 = vmatpush2.bf16.msra.mxu0 0
        %1182 = vmatprep.subr.bf16.mxu0 0
        %1183 = vmatpush2.bf16.msra.mxu0 0
        %1184 = vmatprep.subr.bf16.mxu0 0
        %1185 = vmatpush2.bf16.msra.mxu0 0
        %1186 = vmatprep.mubr.bf16.mxu0 0
        %1187 = vmatmul.mubr.bf16.gmra.mxu0 %v1149
        %v1188 = vpop.f32.mrf.mxu0
        %v1189 = vadd.f32 0.0, %v1188
        %v1190 = vpop.f32.mrf.mxu0
        %v1191 = vpop.f32.mrf.mxu0
        %v1192 = vpop.f32.mrf.mxu0
        %1193 = vdwg.mxu0
        %1194 = vrot.lane.b32.xlu0 %v738, 112
        %v1195 = vpop.permute.xlu0 %1194
        %1196 = vrot.lane.b32.xlu0 %v740, 80
        %v1197 = vpop.permute.xlu0 %1196
        %v1199 = vsel %vm755, %v1195, 0
        %v1202 = vsel %vm755, %v1197, 0
        %1204 = vmatprep.subr.bf16.mxu0 0
        %1205 = vmatpush1.bf16.xpose.msra.mxu0 0
        %1206 = vmatprep.subr.bf16.mxu0 0
        %1207 = vmatpush1.bf16.xpose.msra.mxu0 0
        %1208 = vmatprep.subr.bf16.mxu0 0
        %1209 = vmatpush1.bf16.xpose.msra.mxu0 0
        %1210 = vmatprep.subr.bf16.mxu0 0
        %1211 = vmatpush1.bf16.xpose.msra.mxu0 0
        %1212 = vmatprep.subr.bf16.mxu0 0
        %1213 = vmatpush1.bf16.xpose.msra.mxu0 0
        %1214 = vmatprep.subr.bf16.mxu0 0
        %1215 = vmatpush1.bf16.xpose.msra.mxu0 0
        %1216 = vmatprep.subr.bf16.mxu0 0
        %1217 = vmatpush1.bf16.xpose.msra.mxu0 0
        %1218 = vmatprep.subr.bf16.mxu0 0
        %1219 = vmatpush1.bf16.xpose.msra.mxu0 %v1202
        %1220 = vmatprep.subr.bf16.mxu0 0
        %1221 = vmatpush2.bf16.xpose.msra.mxu0 0
        %1222 = vmatprep.subr.bf16.mxu0 0
        %1223 = vmatpush2.bf16.xpose.msra.mxu0 0
        %1224 = vmatprep.subr.bf16.mxu0 0
        %1225 = vmatpush2.bf16.xpose.msra.mxu0 0
        %1226 = vmatprep.subr.bf16.mxu0 0
        %1227 = vmatpush2.bf16.xpose.msra.mxu0 0
        %1228 = vmatprep.subr.bf16.mxu0 0
        %1229 = vmatpush2.bf16.xpose.msra.mxu0 0
        %1230 = vmatprep.subr.bf16.mxu0 0
        %1231 = vmatpush2.bf16.xpose.msra.mxu0 0
        %1232 = vmatprep.subr.bf16.mxu0 0
        %1233 = vmatpush2.bf16.xpose.msra.mxu0 0
        %1234 = vmatprep.subr.bf16.mxu0 0
        %1235 = vmatpush2.bf16.xpose.msra.mxu0 0
        %1236 = vmatprep.mubr.bf16.mxu0 0
        %1237 = vmatmul.mubr.bf16.gmra.mxu0 %v1199
        %v1238 = vpop.f32.mrf.mxu0
        %v1239 = vadd.f32 %v745, %v1238
        %v1240 = vpop.f32.mrf.mxu0
        %v1241 = vpop.f32.mrf.mxu0
        %v1242 = vpop.f32.mrf.mxu0
        %1243 = vdwg.mxu0
        %1244 = vrot.lane.b32.xlu0 %v739, 112
        %v1245 = vpop.permute.xlu0 %1244
        %1246 = vrot.lane.b32.xlu0 %v741, 80
        %v1247 = vpop.permute.xlu0 %1246
        %v1249 = vsel %vm755, %v1245, 0
        %v1252 = vsel %vm755, %v1247, 0
        %1254 = vmatprep.subr.bf16.mxu0 0
        %1255 = vmatpush1.bf16.xpose.msra.mxu0 0
        %1256 = vmatprep.subr.bf16.mxu0 0
        %1257 = vmatpush1.bf16.xpose.msra.mxu0 0
        %1258 = vmatprep.subr.bf16.mxu0 0
        %1259 = vmatpush1.bf16.xpose.msra.mxu0 0
        %1260 = vmatprep.subr.bf16.mxu0 0
        %1261 = vmatpush1.bf16.xpose.msra.mxu0 0
        %1262 = vmatprep.subr.bf16.mxu0 0
        %1263 = vmatpush1.bf16.xpose.msra.mxu0 0
        %1264 = vmatprep.subr.bf16.mxu0 0
        %1265 = vmatpush1.bf16.xpose.msra.mxu0 0
        %1266 = vmatprep.subr.bf16.mxu0 0
        %1267 = vmatpush1.bf16.xpose.msra.mxu0 0
        %1268 = vmatprep.subr.bf16.mxu0 0
        %1269 = vmatpush1.bf16.xpose.msra.mxu0 %v1252
        %1270 = vmatprep.subr.bf16.mxu0 0
        %1271 = vmatpush2.bf16.xpose.msra.mxu0 0
        %1272 = vmatprep.subr.bf16.mxu0 0
        %1273 = vmatpush2.bf16.xpose.msra.mxu0 0
        %1274 = vmatprep.subr.bf16.mxu0 0
        %1275 = vmatpush2.bf16.xpose.msra.mxu0 0
        %1276 = vmatprep.subr.bf16.mxu0 0
        %1277 = vmatpush2.bf16.xpose.msra.mxu0 0
        %1278 = vmatprep.subr.bf16.mxu0 0
        %1279 = vmatpush2.bf16.xpose.msra.mxu0 0
        %1280 = vmatprep.subr.bf16.mxu0 0
        %1281 = vmatpush2.bf16.xpose.msra.mxu0 0
        %1282 = vmatprep.subr.bf16.mxu0 0
        %1283 = vmatpush2.bf16.xpose.msra.mxu0 0
        %1284 = vmatprep.subr.bf16.mxu0 0
        %1285 = vmatpush2.bf16.xpose.msra.mxu0 0
        %1286 = vmatprep.mubr.bf16.mxu0 0
        %1287 = vmatmul.mubr.bf16.gmra.mxu0 %v1249
        %v1288 = vpop.f32.mrf.mxu0
        %v1289 = vadd.f32 %v749, %v1288
        %v1290 = vpop.f32.mrf.mxu0
        %v1291 = vpop.f32.mrf.mxu0
        %v1292 = vpop.f32.mrf.mxu0
        %1293 = vdwg.mxu0
        %v1294 = vsel %vm755, %v1239, -inf
        %1295 = vmax.xlane.f32.xlu0 %v1294
        %v1296 = vpop.xlane.xlu0 %1295
        %v1297 = vsel %vm755, %v1289, -inf
        %1298 = vmax.xlane.f32.xlu0 %v1297
        %v1299 = vpop.xlane.xlu0 %1298
        %v1300 = vsub.f32 %v1239, %v1296
        %v1301 = vsub.f32 %v1289, %v1299
        %v1302 = vmul.f32 %v1300, 1.442695
        %v1303 = vpow.pop %v1302
        %v1304 = vmul.f32 %v1301, 1.442695
        %v1305 = vpow.pop %v1304
        %v1306 = vsel %vm755, %v1303, 0.0
        %1307 = vadd.xlane.f32.xlu0 %v1306
        %v1308 = vpop.xlane.xlu0 %1307
        %v1309 = vsel %vm755, %v1305, 0.0
        %1310 = vadd.xlane.f32.xlu0 %v1309
        %v1311 = vpop.xlane.xlu0 %1310
        %v1312 = vrcp.pop %v1308
        %v1313 = vrcp.pop %v1311
        %v1314 = vmul.f32 %v1303, %v1312
        %v1315 = vmul.f32 %v1305, %v1313
        %v1316 = vpack.c.bf16 %v1314, %v1314
        %v1317 = vpack.c.bf16 %v1315, %v1315
        %1318 = vrot.lane.b32.xlu0 %v740, 48
        %v1319 = vpop.permute.xlu0 %1318
        %v1321 = vsel %vm755, %v1316, 0
        %v1324 = vsel %vm880, %v1319, 0
        %1326 = vmatprep.subr.bf16.mxu0 0
        %1327 = vmatpush1.bf16.msra.mxu0 0
        %1328 = vmatprep.subr.bf16.mxu0 0
        %1329 = vmatpush1.bf16.msra.mxu0 0
        %1330 = vmatprep.subr.bf16.mxu0 0
        %1331 = vmatpush1.bf16.msra.mxu0 0
        %1332 = vmatprep.subr.bf16.mxu0 0
        %1333 = vmatpush1.bf16.msra.mxu0 0
        %1334 = vmatprep.subr.bf16.mxu0 0
        %1335 = vmatpush1.bf16.msra.mxu0 0
        %1336 = vmatprep.subr.bf16.mxu0 0
        %1337 = vmatpush1.bf16.msra.mxu0 0
        %1338 = vmatprep.subr.bf16.mxu0 0
        %1339 = vmatpush1.bf16.msra.mxu0 0
        %1340 = vmatprep.subr.bf16.mxu0 0
        %1341 = vmatpush1.bf16.msra.mxu0 %v1324
        %1342 = vmatprep.subr.bf16.mxu0 0
        %1343 = vmatpush2.bf16.msra.mxu0 0
        %1344 = vmatprep.subr.bf16.mxu0 0
        %1345 = vmatpush2.bf16.msra.mxu0 0
        %1346 = vmatprep.subr.bf16.mxu0 0
        %1347 = vmatpush2.bf16.msra.mxu0 0
        %1348 = vmatprep.subr.bf16.mxu0 0
        %1349 = vmatpush2.bf16.msra.mxu0 0
        %1350 = vmatprep.subr.bf16.mxu0 0
        %1351 = vmatpush2.bf16.msra.mxu0 0
        %1352 = vmatprep.subr.bf16.mxu0 0
        %1353 = vmatpush2.bf16.msra.mxu0 0
        %1354 = vmatprep.subr.bf16.mxu0 0
        %1355 = vmatpush2.bf16.msra.mxu0 0
        %1356 = vmatprep.subr.bf16.mxu0 0
        %1357 = vmatpush2.bf16.msra.mxu0 0
        %1358 = vmatprep.mubr.bf16.mxu0 0
        %1359 = vmatmul.mubr.bf16.gmra.mxu0 %v1321
        %v1360 = vpop.f32.mrf.mxu0
        %v1361 = vadd.f32 0.0, %v1360
        %v1362 = vpop.f32.mrf.mxu0
        %v1363 = vpop.f32.mrf.mxu0
        %v1364 = vpop.f32.mrf.mxu0
        %1365 = vdwg.mxu0
        %1366 = vrot.lane.b32.xlu0 %v741, 48
        %v1367 = vpop.permute.xlu0 %1366
        %v1369 = vsel %vm755, %v1317, 0
        %v1372 = vsel %vm880, %v1367, 0
        %1374 = vmatprep.subr.bf16.mxu0 0
        %1375 = vmatpush1.bf16.msra.mxu0 0
        %1376 = vmatprep.subr.bf16.mxu0 0
        %1377 = vmatpush1.bf16.msra.mxu0 0
        %1378 = vmatprep.subr.bf16.mxu0 0
        %1379 = vmatpush1.bf16.msra.mxu0 0
        %1380 = vmatprep.subr.bf16.mxu0 0
        %1381 = vmatpush1.bf16.msra.mxu0 0
        %1382 = vmatprep.subr.bf16.mxu0 0
        %1383 = vmatpush1.bf16.msra.mxu0 0
        %1384 = vmatprep.subr.bf16.mxu0 0
        %1385 = vmatpush1.bf16.msra.mxu0 0
        %1386 = vmatprep.subr.bf16.mxu0 0
        %1387 = vmatpush1.bf16.msra.mxu0 0
        %1388 = vmatprep.subr.bf16.mxu0 0
        %1389 = vmatpush1.bf16.msra.mxu0 %v1372
        %1390 = vmatprep.subr.bf16.mxu0 0
        %1391 = vmatpush2.bf16.msra.mxu0 0
        %1392 = vmatprep.subr.bf16.mxu0 0
        %1393 = vmatpush2.bf16.msra.mxu0 0
        %1394 = vmatprep.subr.bf16.mxu0 0
        %1395 = vmatpush2.bf16.msra.mxu0 0
        %1396 = vmatprep.subr.bf16.mxu0 0
        %1397 = vmatpush2.bf16.msra.mxu0 0
        %1398 = vmatprep.subr.bf16.mxu0 0
        %1399 = vmatpush2.bf16.msra.mxu0 0
        %1400 = vmatprep.subr.bf16.mxu0 0
        %1401 = vmatpush2.bf16.msra.mxu0 0
        %1402 = vmatprep.subr.bf16.mxu0 0
        %1403 = vmatpush2.bf16.msra.mxu0 0
        %1404 = vmatprep.subr.bf16.mxu0 0
        %1405 = vmatpush2.bf16.msra.mxu0 0
        %1406 = vmatprep.mubr.bf16.mxu0 0
        %1407 = vmatmul.mubr.bf16.gmra.mxu0 %v1369
        %v1408 = vpop.f32.mrf.mxu0
        %v1409 = vadd.f32 0.0, %v1408
        %v1410 = vpop.f32.mrf.mxu0
        %v1411 = vpop.f32.mrf.mxu0
        %v1412 = vpop.f32.mrf.mxu0
        %1413 = vdwg.mxu0
        %1414 = vrot.lane.b32.xlu0 %v738, 104
        %v1415 = vpop.permute.xlu0 %1414
        %1416 = vrot.lane.b32.xlu0 %v740, 72
        %v1417 = vpop.permute.xlu0 %1416
        %v1419 = vsel %vm755, %v1415, 0
        %v1422 = vsel %vm755, %v1417, 0
        %1424 = vmatprep.subr.bf16.mxu0 0
        %1425 = vmatpush1.bf16.xpose.msra.mxu0 0
        %1426 = vmatprep.subr.bf16.mxu0 0
        %1427 = vmatpush1.bf16.xpose.msra.mxu0 0
        %1428 = vmatprep.subr.bf16.mxu0 0
        %1429 = vmatpush1.bf16.xpose.msra.mxu0 0
        %1430 = vmatprep.subr.bf16.mxu0 0
        %1431 = vmatpush1.bf16.xpose.msra.mxu0 0
        %1432 = vmatprep.subr.bf16.mxu0 0
        %1433 = vmatpush1.bf16.xpose.msra.mxu0 0
        %1434 = vmatprep.subr.bf16.mxu0 0
        %1435 = vmatpush1.bf16.xpose.msra.mxu0 0
        %1436 = vmatprep.subr.bf16.mxu0 0
        %1437 = vmatpush1.bf16.xpose.msra.mxu0 0
        %1438 = vmatprep.subr.bf16.mxu0 0
        %1439 = vmatpush1.bf16.xpose.msra.mxu0 %v1422
        %1440 = vmatprep.subr.bf16.mxu0 0
        %1441 = vmatpush2.bf16.xpose.msra.mxu0 0
        %1442 = vmatprep.subr.bf16.mxu0 0
        %1443 = vmatpush2.bf16.xpose.msra.mxu0 0
        %1444 = vmatprep.subr.bf16.mxu0 0
        %1445 = vmatpush2.bf16.xpose.msra.mxu0 0
        %1446 = vmatprep.subr.bf16.mxu0 0
        %1447 = vmatpush2.bf16.xpose.msra.mxu0 0
        %1448 = vmatprep.subr.bf16.mxu0 0
        %1449 = vmatpush2.bf16.xpose.msra.mxu0 0
        %1450 = vmatprep.subr.bf16.mxu0 0
        %1451 = vmatpush2.bf16.xpose.msra.mxu0 0
        %1452 = vmatprep.subr.bf16.mxu0 0
        %1453 = vmatpush2.bf16.xpose.msra.mxu0 0
        %1454 = vmatprep.subr.bf16.mxu0 0
        %1455 = vmatpush2.bf16.xpose.msra.mxu0 0
        %1456 = vmatprep.mubr.bf16.mxu0 0
        %1457 = vmatmul.mubr.bf16.gmra.mxu0 %v1419
        %v1458 = vpop.f32.mrf.mxu0
        %v1459 = vadd.f32 %v745, %v1458
        %v1460 = vpop.f32.mrf.mxu0
        %v1461 = vpop.f32.mrf.mxu0
        %v1462 = vpop.f32.mrf.mxu0
        %1463 = vdwg.mxu0
        %1464 = vrot.lane.b32.xlu0 %v739, 104
        %v1465 = vpop.permute.xlu0 %1464
        %1466 = vrot.lane.b32.xlu0 %v741, 72
        %v1467 = vpop.permute.xlu0 %1466
        %v1469 = vsel %vm755, %v1465, 0
        %v1472 = vsel %vm755, %v1467, 0
        %1474 = vmatprep.subr.bf16.mxu0 0
        %1475 = vmatpush1.bf16.xpose.msra.mxu0 0
        %1476 = vmatprep.subr.bf16.mxu0 0
        %1477 = vmatpush1.bf16.xpose.msra.mxu0 0
        %1478 = vmatprep.subr.bf16.mxu0 0
        %1479 = vmatpush1.bf16.xpose.msra.mxu0 0
        %1480 = vmatprep.subr.bf16.mxu0 0
        %1481 = vmatpush1.bf16.xpose.msra.mxu0 0
        %1482 = vmatprep.subr.bf16.mxu0 0
        %1483 = vmatpush1.bf16.xpose.msra.mxu0 0
        %1484 = vmatprep.subr.bf16.mxu0 0
        %1485 = vmatpush1.bf16.xpose.msra.mxu0 0
        %1486 = vmatprep.subr.bf16.mxu0 0
        %1487 = vmatpush1.bf16.xpose.msra.mxu0 0
        %1488 = vmatprep.subr.bf16.mxu0 0
        %1489 = vmatpush1.bf16.xpose.msra.mxu0 %v1472
        %1490 = vmatprep.subr.bf16.mxu0 0
        %1491 = vmatpush2.bf16.xpose.msra.mxu0 0
        %1492 = vmatprep.subr.bf16.mxu0 0
        %1493 = vmatpush2.bf16.xpose.msra.mxu0 0
        %1494 = vmatprep.subr.bf16.mxu0 0
        %1495 = vmatpush2.bf16.xpose.msra.mxu0 0
        %1496 = vmatprep.subr.bf16.mxu0 0
        %1497 = vmatpush2.bf16.xpose.msra.mxu0 0
        %1498 = vmatprep.subr.bf16.mxu0 0
        %1499 = vmatpush2.bf16.xpose.msra.mxu0 0
        %1500 = vmatprep.subr.bf16.mxu0 0
        %1501 = vmatpush2.bf16.xpose.msra.mxu0 0
        %1502 = vmatprep.subr.bf16.mxu0 0
        %1503 = vmatpush2.bf16.xpose.msra.mxu0 0
        %1504 = vmatprep.subr.bf16.mxu0 0
        %1505 = vmatpush2.bf16.xpose.msra.mxu0 0
        %1506 = vmatprep.mubr.bf16.mxu0 0
        %1507 = vmatmul.mubr.bf16.gmra.mxu0 %v1469
        %v1508 = vpop.f32.mrf.mxu0
        %v1509 = vadd.f32 %v749, %v1508
        %v1510 = vpop.f32.mrf.mxu0
        %v1511 = vpop.f32.mrf.mxu0
        %v1512 = vpop.f32.mrf.mxu0
        %1513 = vdwg.mxu0
        %v1514 = vsel %vm755, %v1459, -inf
        %1515 = vmax.xlane.f32.xlu0 %v1514
        %v1516 = vpop.xlane.xlu0 %1515
        %v1517 = vsel %vm755, %v1509, -inf
        %1518 = vmax.xlane.f32.xlu0 %v1517
        %v1519 = vpop.xlane.xlu0 %1518
        %v1520 = vsub.f32 %v1459, %v1516
        %v1521 = vsub.f32 %v1509, %v1519
        %v1522 = vmul.f32 %v1520, 1.442695
        %v1523 = vpow.pop %v1522
        %v1524 = vmul.f32 %v1521, 1.442695
        %v1525 = vpow.pop %v1524
        %v1526 = vsel %vm755, %v1523, 0.0
        %1527 = vadd.xlane.f32.xlu0 %v1526
        %v1528 = vpop.xlane.xlu0 %1527
        %v1529 = vsel %vm755, %v1525, 0.0
        %1530 = vadd.xlane.f32.xlu0 %v1529
        %v1531 = vpop.xlane.xlu0 %1530
        %v1532 = vrcp.pop %v1528
        %v1533 = vrcp.pop %v1531
        %v1534 = vmul.f32 %v1523, %v1532
        %v1535 = vmul.f32 %v1525, %v1533
        %v1536 = vpack.c.bf16 %v1534, %v1534
        %v1537 = vpack.c.bf16 %v1535, %v1535
        %1538 = vrot.lane.b32.xlu0 %v740, 40
        %v1539 = vpop.permute.xlu0 %1538
        %v1541 = vsel %vm755, %v1536, 0
        %v1544 = vsel %vm880, %v1539, 0
        %1546 = vmatprep.subr.bf16.mxu0 0
        %1547 = vmatpush1.bf16.msra.mxu0 0
        %1548 = vmatprep.subr.bf16.mxu0 0
        %1549 = vmatpush1.bf16.msra.mxu0 0
        %1550 = vmatprep.subr.bf16.mxu0 0
        %1551 = vmatpush1.bf16.msra.mxu0 0
        %1552 = vmatprep.subr.bf16.mxu0 0
        %1553 = vmatpush1.bf16.msra.mxu0 0
        %1554 = vmatprep.subr.bf16.mxu0 0
        %1555 = vmatpush1.bf16.msra.mxu0 0
        %1556 = vmatprep.subr.bf16.mxu0 0
        %1557 = vmatpush1.bf16.msra.mxu0 0
        %1558 = vmatprep.subr.bf16.mxu0 0
        %1559 = vmatpush1.bf16.msra.mxu0 0
        %1560 = vmatprep.subr.bf16.mxu0 0
        %1561 = vmatpush1.bf16.msra.mxu0 %v1544
        %1562 = vmatprep.subr.bf16.mxu0 0
        %1563 = vmatpush2.bf16.msra.mxu0 0
        %1564 = vmatprep.subr.bf16.mxu0 0
        %1565 = vmatpush2.bf16.msra.mxu0 0
        %1566 = vmatprep.subr.bf16.mxu0 0
        %1567 = vmatpush2.bf16.msra.mxu0 0
        %1568 = vmatprep.subr.bf16.mxu0 0
        %1569 = vmatpush2.bf16.msra.mxu0 0
        %1570 = vmatprep.subr.bf16.mxu0 0
        %1571 = vmatpush2.bf16.msra.mxu0 0
        %1572 = vmatprep.subr.bf16.mxu0 0
        %1573 = vmatpush2.bf16.msra.mxu0 0
        %1574 = vmatprep.subr.bf16.mxu0 0
        %1575 = vmatpush2.bf16.msra.mxu0 0
        %1576 = vmatprep.subr.bf16.mxu0 0
        %1577 = vmatpush2.bf16.msra.mxu0 0
        %1578 = vmatprep.mubr.bf16.mxu0 0
        %1579 = vmatmul.mubr.bf16.gmra.mxu0 %v1541
        %v1580 = vpop.f32.mrf.mxu0
        %v1581 = vadd.f32 0.0, %v1580
        %v1582 = vpop.f32.mrf.mxu0
        %v1583 = vpop.f32.mrf.mxu0
        %v1584 = vpop.f32.mrf.mxu0
        %1585 = vdwg.mxu0
        %1586 = vrot.lane.b32.xlu0 %v741, 40
        %v1587 = vpop.permute.xlu0 %1586
        %v1589 = vsel %vm755, %v1537, 0
        %v1592 = vsel %vm880, %v1587, 0
        %1594 = vmatprep.subr.bf16.mxu0 0
        %1595 = vmatpush1.bf16.msra.mxu0 0
        %1596 = vmatprep.subr.bf16.mxu0 0
        %1597 = vmatpush1.bf16.msra.mxu0 0
        %1598 = vmatprep.subr.bf16.mxu0 0
        %1599 = vmatpush1.bf16.msra.mxu0 0
        %1600 = vmatprep.subr.bf16.mxu0 0
        %1601 = vmatpush1.bf16.msra.mxu0 0
        %1602 = vmatprep.subr.bf16.mxu0 0
        %1603 = vmatpush1.bf16.msra.mxu0 0
        %1604 = vmatprep.subr.bf16.mxu0 0
        %1605 = vmatpush1.bf16.msra.mxu0 0
        %1606 = vmatprep.subr.bf16.mxu0 0
        %1607 = vmatpush1.bf16.msra.mxu0 0
        %1608 = vmatprep.subr.bf16.mxu0 0
        %1609 = vmatpush1.bf16.msra.mxu0 %v1592
        %1610 = vmatprep.subr.bf16.mxu0 0
        %1611 = vmatpush2.bf16.msra.mxu0 0
        %1612 = vmatprep.subr.bf16.mxu0 0
        %1613 = vmatpush2.bf16.msra.mxu0 0
        %1614 = vmatprep.subr.bf16.mxu0 0
        %1615 = vmatpush2.bf16.msra.mxu0 0
        %1616 = vmatprep.subr.bf16.mxu0 0
        %1617 = vmatpush2.bf16.msra.mxu0 0
        %1618 = vmatprep.subr.bf16.mxu0 0
        %1619 = vmatpush2.bf16.msra.mxu0 0
        %1620 = vmatprep.subr.bf16.mxu0 0
        %1621 = vmatpush2.bf16.msra.mxu0 0
        %1622 = vmatprep.subr.bf16.mxu0 0
        %1623 = vmatpush2.bf16.msra.mxu0 0
        %1624 = vmatprep.subr.bf16.mxu0 0
        %1625 = vmatpush2.bf16.msra.mxu0 0
        %1626 = vmatprep.mubr.bf16.mxu0 0
        %1627 = vmatmul.mubr.bf16.gmra.mxu0 %v1589
        %v1628 = vpop.f32.mrf.mxu0
        %v1629 = vadd.f32 0.0, %v1628
        %v1630 = vpop.f32.mrf.mxu0
        %v1631 = vpop.f32.mrf.mxu0
        %v1632 = vpop.f32.mrf.mxu0
        %1633 = vdwg.mxu0
        %1636 = vrot.lane.b32.xlu0 %v1141, 8
        %v1637 = vpop.permute.xlu0 %1636
        %1638 = vrot.lane.b32.xlu0 %v1189, 8
        %v1639 = vpop.permute.xlu0 %1638
        %1644 = vrot.lane.b32.xlu0 %v1361, 16
        %v1645 = vpop.permute.xlu0 %1644
        %1646 = vrot.lane.b32.xlu0 %v1409, 16
        %v1647 = vpop.permute.xlu0 %1646
        %1652 = vrot.lane.b32.xlu0 %v1581, 24
        %v1653 = vpop.permute.xlu0 %1652
        %1654 = vrot.lane.b32.xlu0 %v1629, 24
        %v1655 = vpop.permute.xlu0 %1654
        %v1658 = vsel %vm755, %v919, %v1637
        %v1659 = vsel %vm755, %v967, %v1639
        %vm1660 = vcmask 130048
        %v1661 = vsel %vm1660, %v1658, %v1645
        %v1662 = vsel %vm1660, %v1659, %v1647
        %vm1663 = vcmask 195584
        %v1664 = vsel %vm1663, %v1661, %v1653
        %v1665 = vsel %vm1663, %v1662, %v1655
        %v1666 = vld [vmem:[%s558] sm:$0xf]
        %v1667 = vld [vmem:[%s558 + $0x4] sm:$0xf]
        %v1668 = vld [vmem:[%s558 + $0x8] sm:$0xf]
        %v1669 = vld [vmem:[%s558 + $0xc] sm:$0xf]
        %v1670 = vpack.c.bf16 %v1665, %v1664
        %v1671 = vlaneseq
        %v1672 = vshrl.u32 %v1671, 7
        %v1673 = vsub.s32 1, %v1672
        %v1674 = vrot.slane %v646, %v1673
        %v1679 = vunpack.c.l.b16 %v1666
        %v1680 = vunpack.c.l.b16 %v1667
        %v1681 = vunpack.c.l.b16 %v1668
        %v1682 = vunpack.c.l.b16 %v1669
        %v1683 = vpack.c.b16 %v1680, %v1679
        %v1684 = vpack.c.b16 %v1682, %v1681
        %v1688 = vsel %vm668, %v1670, 0
        %1690 = vmatprep.subr.bf16.mxu0 0
        %1691 = vmatpush1.bf16.msra.mxu0 0
        %1692 = vmatprep.subr.bf16.mxu0 0
        %1693 = vmatpush1.bf16.msra.mxu0 0
        %1694 = vmatprep.subr.bf16.mxu0 0
        %1695 = vmatpush1.bf16.msra.mxu0 0
        %1696 = vmatprep.subr.bf16.mxu0 0
        %1697 = vmatpush1.bf16.msra.mxu0 0
        %1698 = vmatprep.subr.bf16.mxu0 0
        %1699 = vmatpush1.bf16.msra.mxu0 0
        %1700 = vmatprep.subr.bf16.mxu0 0
        %1701 = vmatpush1.bf16.msra.mxu0 0
        %1702 = vmatprep.subr.bf16.mxu0 0
        %1703 = vmatpush1.bf16.msra.mxu0 %v1684
        %1704 = vmatprep.subr.bf16.mxu0 0
        %1705 = vmatpush1.bf16.msra.mxu0 %v1683
        %1706 = vmatprep.subr.bf16.mxu0 0
        %1707 = vmatpush2.bf16.msra.mxu0 0
        %1708 = vmatprep.subr.bf16.mxu0 0
        %1709 = vmatpush2.bf16.msra.mxu0 0
        %1710 = vmatprep.subr.bf16.mxu0 0
        %1711 = vmatpush2.bf16.msra.mxu0 0
        %1712 = vmatprep.subr.bf16.mxu0 0
        %1713 = vmatpush2.bf16.msra.mxu0 0
        %1714 = vmatprep.subr.bf16.mxu0 0
        %1715 = vmatpush2.bf16.msra.mxu0 0
        %1716 = vmatprep.subr.bf16.mxu0 0
        %1717 = vmatpush2.bf16.msra.mxu0 0
        %1718 = vmatprep.subr.bf16.mxu0 0
        %1719 = vmatpush2.bf16.msra.mxu0 0
        %1720 = vmatprep.subr.bf16.mxu0 0
        %1721 = vmatpush2.bf16.msra.mxu0 0
        %1722 = vmatprep.mubr.bf16.mxu0 0
        %1723 = vmatmul.mubr.bf16.gmra.mxu0 %v1688
        %v1724 = vpop.f32.mrf.mxu0
        %v1725 = vadd.f32 %v1674, %v1724
        %v1726 = vpop.f32.mrf.mxu0
        %v1727 = vpop.f32.mrf.mxu0
        %v1728 = vadd.f32 %v1674, %v1727
        %v1729 = vpop.f32.mrf.mxu0
        %1730 = vdwg.mxu0
        %v1731 = vadd.f32 %v1725, %v643
        %v1732 = vadd.f32 %v1728, %v644
        %v1733 = vsel %vm668, %v1731, 0.0
        %1734 = vadd.xlane.f32.xlu0 %v1733
        %v1735 = vpop.xlane.xlu0 %1734
        %v1736 = vsel %vm668, %v1732, 0.0
        %1737 = vadd.xlane.f32.xlu0 %v1736
        %v1738 = vpop.xlane.xlu0 %1737
        %v1739 = vrcp.pop 32.0
        %v1740 = vmul.f32 %v1735, %v1739
        %v1741 = vmul.f32 %v1738, %v1739
        %v1742 = vsub.f32 %v1731, %v1740
        %v1743 = vsub.f32 %v1732, %v1741
        %v1744 = vmul.f32 %v1742, %v1742
        %v1745 = vmul.f32 %v1743, %v1743
        %v1746 = vsel %vm668, %v1744, 0.0
        %1747 = vadd.xlane.f32.xlu0 %v1746
        %v1748 = vpop.xlane.xlu0 %1747
        %v1749 = vsel %vm668, %v1745, 0.0
        %1750 = vadd.xlane.f32.xlu0 %v1749
        %v1751 = vpop.xlane.xlu0 %1750
        %v1752 = vmul.f32 %v1748, %v1739
        %v1753 = vmul.f32 %v1751, %v1739
        %v1754 = vadd.f32 %v1752, 1e-12
        %v1755 = vadd.f32 %v1753, 1e-12
        %v1756 = vrsqrt.pop %v1754
        %v1757 = vrsqrt.pop %v1755
        %v1758 = vmul.f32 %v1742, %v1756
        %v1759 = vmul.f32 %v1743, %v1757
        %v1760 = vlaneseq
        %v1761 = vshrl.u32 %v1760, 7
        %v1762 = vsub.s32 2, %v1761
        %v1763 = vrot.slane %v646, %v1762
        %v1764 = vmul.f32 %v1758, %v1763
        %v1765 = vmul.f32 %v1759, %v1763
        %v1766 = vlaneseq
        %v1767 = vshrl.u32 %v1766, 7
        %v1768 = vsub.s32 3, %v1767
        %v1769 = vrot.slane %v646, %v1768
        %v1770 = vadd.f32 %v1764, %v1769
        %v1771 = vadd.f32 %v1765, %v1769
        %v1772 = vld [vmem:[%s567] sm:$0xf]
        %v1773 = vld [vmem:[%s567 + $0x4] sm:$0xf]
        %v1774 = vld [vmem:[%s567 + $0x8] sm:$0xf]
        %v1775 = vld [vmem:[%s567 + $0xc] sm:$0xf]
        %v1776 = vpack.c.bf16 %v1771, %v1770
        %v1777 = vlaneseq
        %v1778 = vshrl.u32 %v1777, 7
        %v1779 = vsub.s32 4, %v1778
        %v1780 = vrot.slane %v646, %v1779
        %v1785 = vunpack.c.l.b16 %v1772
        %v1786 = vunpack.c.l.b16 %v1773
        %v1787 = vunpack.c.l.b16 %v1774
        %v1788 = vunpack.c.l.b16 %v1775
        %v1789 = vpack.c.b16 %v1786, %v1785
        %v1790 = vpack.c.b16 %v1788, %v1787
        %v1794 = vsel %vm668, %v1776, 0
        %1796 = vmatprep.subr.bf16.mxu0 0
        %1797 = vmatpush1.bf16.msra.mxu0 0
        %1798 = vmatprep.subr.bf16.mxu0 0
        %1799 = vmatpush1.bf16.msra.mxu0 0
        %1800 = vmatprep.subr.bf16.mxu0 0
        %1801 = vmatpush1.bf16.msra.mxu0 0
        %1802 = vmatprep.subr.bf16.mxu0 0
        %1803 = vmatpush1.bf16.msra.mxu0 0
        %1804 = vmatprep.subr.bf16.mxu0 0
        %1805 = vmatpush1.bf16.msra.mxu0 0
        %1806 = vmatprep.subr.bf16.mxu0 0
        %1807 = vmatpush1.bf16.msra.mxu0 0
        %1808 = vmatprep.subr.bf16.mxu0 0
        %1809 = vmatpush1.bf16.msra.mxu0 %v1790
        %1810 = vmatprep.subr.bf16.mxu0 0
        %1811 = vmatpush1.bf16.msra.mxu0 %v1789
        %1812 = vmatprep.subr.bf16.mxu0 0
        %1813 = vmatpush2.bf16.msra.mxu0 0
        %1814 = vmatprep.subr.bf16.mxu0 0
        %1815 = vmatpush2.bf16.msra.mxu0 0
        %1816 = vmatprep.subr.bf16.mxu0 0
        %1817 = vmatpush2.bf16.msra.mxu0 0
        %1818 = vmatprep.subr.bf16.mxu0 0
        %1819 = vmatpush2.bf16.msra.mxu0 0
        %1820 = vmatprep.subr.bf16.mxu0 0
        %1821 = vmatpush2.bf16.msra.mxu0 0
        %1822 = vmatprep.subr.bf16.mxu0 0
        %1823 = vmatpush2.bf16.msra.mxu0 0
        %1824 = vmatprep.subr.bf16.mxu0 0
        %1825 = vmatpush2.bf16.msra.mxu0 0
        %1826 = vmatprep.subr.bf16.mxu0 0
        %1827 = vmatpush2.bf16.msra.mxu0 0
        %1828 = vmatprep.mubr.bf16.mxu0 0
        %1829 = vmatmul.mubr.bf16.gmra.mxu0 %v1794
        %v1830 = vpop.f32.mrf.mxu0
        %v1831 = vadd.f32 %v1780, %v1830
        %v1832 = vpop.f32.mrf.mxu0
        %v1833 = vpop.f32.mrf.mxu0
        %v1834 = vadd.f32 %v1780, %v1833
        %v1835 = vpop.f32.mrf.mxu0
        %1836 = vdwg.mxu0
        %v1837 = vmul.f32 %v1831, 0.5
        %v1838 = vmul.f32 %v1834, 0.5
        %v1839 = vmul.f32 %v1831, 0.044715
        %v1840 = vmul.f32 %v1834, 0.044715
        %v1841 = vmul.f32 %v1839, %v1831
        %v1842 = vmul.f32 %v1840, %v1834
        %v1843 = vmul.f32 %v1841, %v1831
        %v1844 = vmul.f32 %v1842, %v1834
        %v1845 = vadd.f32 %v1831, %v1843
        %v1846 = vadd.f32 %v1834, %v1844
        %v1847 = vmul.f32 %v1845, 0.7978846
        %v1848 = vmul.f32 %v1846, 0.7978846
        %v1849 = vtanh.pop %v1847
        %v1850 = vtanh.pop %v1848
        %v1851 = vadd.f32 %v1849, 1.0
        %v1852 = vadd.f32 %v1850, 1.0
        %v1853 = vmul.f32 %v1837, %v1851
        %v1854 = vmul.f32 %v1838, %v1852
        %v1855 = vld [vmem:[%s576] sm:$0xf]
        %v1856 = vld [vmem:[%s576 + $0x4] sm:$0xf]
        %v1857 = vld [vmem:[%s576 + $0x8] sm:$0xf]
        %v1858 = vld [vmem:[%s576 + $0xc] sm:$0xf]
        %v1859 = vld [vmem:[%s576 + $0x10] sm:$0xf]
        %v1860 = vld [vmem:[%s576 + $0x14] sm:$0xf]
        %v1861 = vld [vmem:[%s576 + $0x18] sm:$0xf]
        %v1862 = vld [vmem:[%s576 + $0x1c] sm:$0xf]
        %v1863 = vpack.c.bf16 %v1854, %v1853
        %v1864 = vlaneseq
        %v1865 = vshrl.u32 %v1864, 7
        %v1866 = vsub.s32 5, %v1865
        %v1867 = vrot.slane %v646, %v1866
        %v1876 = vunpack.c.l.b16 %v1855
        %v1877 = vunpack.c.l.b16 %v1856
        %v1878 = vunpack.c.l.b16 %v1857
        %v1879 = vunpack.c.l.b16 %v1858
        %v1880 = vunpack.c.l.b16 %v1859
        %v1881 = vunpack.c.l.b16 %v1860
        %v1882 = vunpack.c.l.b16 %v1861
        %v1883 = vunpack.c.l.b16 %v1862
        %v1884 = vpack.c.b16 %v1877, %v1876
        %v1885 = vpack.c.b16 %v1879, %v1878
        %v1886 = vpack.c.b16 %v1881, %v1880
        %v1887 = vpack.c.b16 %v1883, %v1882
        %vm1892 = vcmask 523264
        %v1894 = vsel %vm1892, %v1863, 0
        %1896 = vmatprep.subr.bf16.mxu0 0
        %1897 = vmatpush1.bf16.msra.mxu0 0
        %1898 = vmatprep.subr.bf16.mxu0 0
        %1899 = vmatpush1.bf16.msra.mxu0 0
        %1900 = vmatprep.subr.bf16.mxu0 0
        %1901 = vmatpush1.bf16.msra.mxu0 0
        %1902 = vmatprep.subr.bf16.mxu0 0
        %1903 = vmatpush1.bf16.msra.mxu0 0
        %1904 = vmatprep.subr.bf16.mxu0 0
        %1905 = vmatpush1.bf16.msra.mxu0 %v1887
        %1906 = vmatprep.subr.bf16.mxu0 0
        %1907 = vmatpush1.bf16.msra.mxu0 %v1886
        %1908 = vmatprep.subr.bf16.mxu0 0
        %1909 = vmatpush1.bf16.msra.mxu0 %v1885
        %1910 = vmatprep.subr.bf16.mxu0 0
        %1911 = vmatpush1.bf16.msra.mxu0 %v1884
        %1912 = vmatprep.subr.bf16.mxu0 0
        %1913 = vmatpush2.bf16.msra.mxu0 0
        %1914 = vmatprep.subr.bf16.mxu0 0
        %1915 = vmatpush2.bf16.msra.mxu0 0
        %1916 = vmatprep.subr.bf16.mxu0 0
        %1917 = vmatpush2.bf16.msra.mxu0 0
        %1918 = vmatprep.subr.bf16.mxu0 0
        %1919 = vmatpush2.bf16.msra.mxu0 0
        %1920 = vmatprep.subr.bf16.mxu0 0
        %1921 = vmatpush2.bf16.msra.mxu0 0
        %1922 = vmatprep.subr.bf16.mxu0 0
        %1923 = vmatpush2.bf16.msra.mxu0 0
        %1924 = vmatprep.subr.bf16.mxu0 0
        %1925 = vmatpush2.bf16.msra.mxu0 0
        %1926 = vmatprep.subr.bf16.mxu0 0
        %1927 = vmatpush2.bf16.msra.mxu0 0
        %1928 = vmatprep.mubr.bf16.mxu0 0
        %1929 = vmatmul.mubr.bf16.gmra.mxu0 %v1894
        %v1930 = vpop.f32.mrf.mxu0
        %v1931 = vadd.f32 %v1867, %v1930
        %v1932 = vpop.f32.mrf.mxu0
        %v1933 = vpop.f32.mrf.mxu0
        %v1934 = vadd.f32 %v1867, %v1933
        %v1935 = vpop.f32.mrf.mxu0
        %1936 = vdwg.mxu0
        %v1937 = vadd.f32 %v1931, %v1770
        %v1938 = vadd.f32 %v1934, %v1771
        %v1939 = vsel %vm668, %v1937, 0.0
        %1940 = vadd.xlane.f32.xlu0 %v1939
        %v1941 = vpop.xlane.xlu0 %1940
        %v1942 = vsel %vm668, %v1938, 0.0
        %1943 = vadd.xlane.f32.xlu0 %v1942
        %v1944 = vpop.xlane.xlu0 %1943
        %v1945 = vmul.f32 %v1941, %v1739
        %v1946 = vmul.f32 %v1944, %v1739
        %v1947 = vsub.f32 %v1937, %v1945
        %v1948 = vsub.f32 %v1938, %v1946
        %v1949 = vmul.f32 %v1947, %v1947
        %v1950 = vmul.f32 %v1948, %v1948
        %v1951 = vsel %vm668, %v1949, 0.0
        %1952 = vadd.xlane.f32.xlu0 %v1951
        %v1953 = vpop.xlane.xlu0 %1952
        %v1954 = vsel %vm668, %v1950, 0.0
        %1955 = vadd.xlane.f32.xlu0 %v1954
        %v1956 = vpop.xlane.xlu0 %1955
        %v1957 = vmul.f32 %v1953, %v1739
        %v1958 = vmul.f32 %v1956, %v1739
        %v1959 = vadd.f32 %v1957, 1e-12
        %v1960 = vadd.f32 %v1958, 1e-12
        %v1961 = vrsqrt.pop %v1959
        %v1962 = vrsqrt.pop %v1960
        %v1963 = vmul.f32 %v1947, %v1961
        %v1964 = vmul.f32 %v1948, %v1962
        %v1965 = vlaneseq
        %v1966 = vshrl.u32 %v1965, 7
        %v1967 = vsub.s32 6, %v1966
        %v1968 = vrot.slane %v646, %v1967
        %v1969 = vmul.f32 %v1963, %v1968
        %v1970 = vmul.f32 %v1964, %v1968
        %v1971 = vlaneseq
        %v1972 = vshrl.u32 %v1971, 7
        %v1973 = vsub.s32 7, %v1972
        %v1974 = vrot.slane %v646, %v1973
        %v1975 = vadd.f32 %v1969, %v1974
        %v1976 = vadd.f32 %v1970, %v1974
        %1977 = vst.msk [vmem:[#allocation2] sm:$0xff] %vm668, %v1975
        %1978 = vst.msk [vmem:[#allocation2 + $0x8] sm:$0xff] %vm668, %v1976
        %p1979 = scmp.eq.s32.totalorder %s29, 1
        // Predicated region
        $region73: #{nbert_forward.1} parent=67 // pred_check
          %p1980 = pneg %p1979
        $region74: #{nbert_forward.1} parent=67 // pred_check_branch
          %1982 = sbr.rel (%p1980) target = $region76
        $region75: #{nbert_forward.1} parent=67 // pred_region
          %v1983 = vld [vmem:[#allocation2] ss:$8 sm:$0x3]
          %v1984 = vld [vmem:[%s589] sm:$0xf]
          %v1985 = vld [vmem:[%s589 + $0x4] sm:$0xf]
          %v1986 = vld [vmem:[%s589 + $0x8] sm:$0xf]
          %v1987 = vld [vmem:[%s589 + $0xc] sm:$0xf]
          %v1988 = vpack.c.bf16 %v1983, %v1983
          %v1989 = vld [vmem:[%s592] sm:$0x1]
          %v1991 = vlaneseq
          %v1992 = vshrl.u32 %v1991, 7
          %v1993 = vsub.s32 0, %v1992
          %v1994 = vrot.slane %v1989, %v1993
          %v2000 = vunpack.c.l.b16 %v1984
          %v2001 = vunpack.c.l.b16 %v1985
          %v2002 = vunpack.c.l.b16 %v1986
          %v2003 = vunpack.c.l.b16 %v1987
          %v2004 = vpack.c.b16 %v2001, %v2000
          %v2005 = vpack.c.b16 %v2003, %v2002
          %v2009 = vsel %vm668, %v1988, 0
          %2011 = vmatprep.subr.bf16.mxu0 0
          %2012 = vmatpush1.bf16.msra.mxu0 0
          %2013 = vmatprep.subr.bf16.mxu0 0
          %2014 = vmatpush1.bf16.msra.mxu0 0
          %2015 = vmatprep.subr.bf16.mxu0 0
          %2016 = vmatpush1.bf16.msra.mxu0 0
          %2017 = vmatprep.subr.bf16.mxu0 0
          %2018 = vmatpush1.bf16.msra.mxu0 0
          %2019 = vmatprep.subr.bf16.mxu0 0
          %2020 = vmatpush1.bf16.msra.mxu0 0
          %2021 = vmatprep.subr.bf16.mxu0 0
          %2022 = vmatpush1.bf16.msra.mxu0 0
          %2023 = vmatprep.subr.bf16.mxu0 0
          %2024 = vmatpush1.bf16.msra.mxu0 %v2005
          %2025 = vmatprep.subr.bf16.mxu0 0
          %2026 = vmatpush1.bf16.msra.mxu0 %v2004
          %2027 = vmatprep.subr.bf16.mxu0 0
          %2028 = vmatpush2.bf16.msra.mxu0 0
          %2029 = vmatprep.subr.bf16.mxu0 0
          %2030 = vmatpush2.bf16.msra.mxu0 0
          %2031 = vmatprep.subr.bf16.mxu0 0
          %2032 = vmatpush2.bf16.msra.mxu0 0
          %2033 = vmatprep.subr.bf16.mxu0 0
          %2034 = vmatpush2.bf16.msra.mxu0 0
          %2035 = vmatprep.subr.bf16.mxu0 0
          %2036 = vmatpush2.bf16.msra.mxu0 0
          %2037 = vmatprep.subr.bf16.mxu0 0
          %2038 = vmatpush2.bf16.msra.mxu0 0
          %2039 = vmatprep.subr.bf16.mxu0 0
          %2040 = vmatpush2.bf16.msra.mxu0 0
          %2041 = vmatprep.subr.bf16.mxu0 0
          %2042 = vmatpush2.bf16.msra.mxu0 0
          %2043 = vmatprep.mubr.bf16.mxu0 0
          %2044 = vmatmul.mubr.bf16.gmra.mxu0 %v2009
          %v2045 = vpop.f32.mrf.mxu0
          %v2046 = vadd.f32 %v1994, %v2045
          %v2047 = vpop.f32.mrf.mxu0
          %v2048 = vpop.f32.mrf.mxu0
          %v2049 = vpop.f32.mrf.mxu0
          %2050 = vdwg.mxu0
          %v2051 = vtanh.pop %v2046
          %s2052 = smul.u32 %s28, 2
          %s2053 = scalar_lea.vmem [#allocation3], %s2052
          %vm2054 = vcmask 254976
          %2055 = vst.msk [vmem:[%s2053] sm:$0x3] %vm2054, %v2051
          %p2056 = scmp.eq.s32.totalorder %s28, 1
          // Predicated region
          $region77: #{nbert_forward.1} parent=75 // pred_check
            %p2057 = pneg %p2056
          $region78: #{nbert_forward.1} parent=75 // pred_check_branch
            %2059 = sbr.rel (%p2057) target = $region80
          $region79: #{nbert_forward.1} parent=75 // pred_region
            %s2060 = scalar_lea.vmem [#allocation3], 2
            %v2061 = vld [vmem:[%s2060] sm:$0x3]
            %v2062 = vld [vmem:[#allocation3] sm:$0x3]
            %2064 = vrot.lane.b32.xlu0 %v2062, 32
            %v2065 = vpop.permute.xlu0 %2064
            %v2067 = vsel %vm668, %v2061, %v2065
            %v2068 = vld [vmem:[%s10] sm:$0xf]
            %v2069 = vld [vmem:[%s10 + $0x4] sm:$0xf]
            %v2070 = vld [vmem:[%s10 + $0x8] sm:$0xf]
            %v2071 = vld [vmem:[%s10 + $0xc] sm:$0xf]
            %v2072 = vld [vmem:[%s10 + $0x10] sm:$0xf]
            %v2073 = vld [vmem:[%s10 + $0x14] sm:$0xf]
            %v2074 = vld [vmem:[%s10 + $0x18] sm:$0xf]
            %v2075 = vld [vmem:[%s10 + $0x1c] sm:$0xf]
            %v2076 = vpack.c.bf16 %v2067, %v2067
            %v2077 = vld [vmem:[%s11] sm:$0x1]
            %v2079 = vlaneseq
            %v2080 = vshrl.u32 %v2079, 7
            %v2081 = vsub.s32 0, %v2080
            %v2082 = vrot.slane %v2077, %v2081
            %v2092 = vunpack.c.l.b16 %v2068
            %v2093 = vunpack.c.l.b16 %v2069
            %v2094 = vunpack.c.l.b16 %v2070
            %v2095 = vunpack.c.l.b16 %v2071
            %v2096 = vunpack.c.l.b16 %v2072
            %v2097 = vunpack.c.l.b16 %v2073
            %v2098 = vunpack.c.l.b16 %v2074
            %v2099 = vunpack.c.l.b16 %v2075
            %v2100 = vpack.c.b16 %v2093, %v2092
            %v2101 = vpack.c.b16 %v2095, %v2094
            %v2102 = vpack.c.b16 %v2097, %v2096
            %v2103 = vpack.c.b16 %v2099, %v2098
            %v2109 = vsel %vm1892, %v2076, 0
            %2111 = vmatprep.subr.bf16.mxu0 0
            %2112 = vmatpush1.bf16.msra.mxu0 0
            %2113 = vmatprep.subr.bf16.mxu0 0
            %2114 = vmatpush1.bf16.msra.mxu0 0
            %2115 = vmatprep.subr.bf16.mxu0 0
            %2116 = vmatpush1.bf16.msra.mxu0 0
            %2117 = vmatprep.subr.bf16.mxu0 0
            %2118 = vmatpush1.bf16.msra.mxu0 0
            %2119 = vmatprep.subr.bf16.mxu0 0
            %2120 = vmatpush1.bf16.msra.mxu0 %v2103
            %2121 = vmatprep.subr.bf16.mxu0 0
            %2122 = vmatpush1.bf16.msra.mxu0 %v2102
            %2123 = vmatprep.subr.bf16.mxu0 0
            %2124 = vmatpush1.bf16.msra.mxu0 %v2101
            %2125 = vmatprep.subr.bf16.mxu0 0
            %2126 = vmatpush1.bf16.msra.mxu0 %v2100
            %2127 = vmatprep.subr.bf16.mxu0 0
            %2128 = vmatpush2.bf16.msra.mxu0 0
            %2129 = vmatprep.subr.bf16.mxu0 0
            %2130 = vmatpush2.bf16.msra.mxu0 0
            %2131 = vmatprep.subr.bf16.mxu0 0
            %2132 = vmatpush2.bf16.msra.mxu0 0
            %2133 = vmatprep.subr.bf16.mxu0 0
            %2134 = vmatpush2.bf16.msra.mxu0 0
            %2135 = vmatprep.subr.bf16.mxu0 0
            %2136 = vmatpush2.bf16.msra.mxu0 0
            %2137 = vmatprep.subr.bf16.mxu0 0
            %2138 = vmatpush2.bf16.msra.mxu0 0
            %2139 = vmatprep.subr.bf16.mxu0 0
            %2140 = vmatpush2.bf16.msra.mxu0 0
            %2141 = vmatprep.subr.bf16.mxu0 0
            %2142 = vmatpush2.bf16.msra.mxu0 0
            %2143 = vmatprep.mubr.bf16.mxu0 0
            %2144 = vmatmul.mubr.bf16.gmra.mxu0 %v2109
            %v2145 = vpop.f32.mrf.mxu0
            %v2146 = vadd.f32 %v2082, %v2145
            %v2147 = vpop.f32.mrf.mxu0
            %v2148 = vpop.f32.mrf.mxu0
            %v2149 = vpop.f32.mrf.mxu0
            %2150 = vdwg.mxu0
            %2151 = vst [vmem:[#allocation4] sm:$0x3] %v2146
          $region80: #{nbert_forward.1} parent=75 // pred_fallthru
            _
        $region76: #{nbert_forward.1} parent=67 // pred_fallthru
          _
        // Predicated region
        $region81: #{nbert_forward.1} parent=67 // pred_check
          %p2152 = pneg %p346
        $region82: #{nbert_forward.1} parent=67 // pred_check_branch
          %2154 = sbr.rel (%p2152) target = $region84
        $region83: #{nbert_forward.1} parent=67 // pred_region
          %s2156 = ssub.s32 32, 32
          %2157 = vsyncadd [#allocation5], %s2156
          %s2159 = sshll.u32 [#allocation4], 4
          %s2160 = int_to_ptr.vmem [resolvable:$true] %s2159
          %2162 = dma.vmem_to_hbm [thread:$0]  %s2160, 32, %s12, [#allocation5]
        $region84: #{nbert_forward.1} parent=67 // pred_fallthru
          _
        // Predicated region
        $region85: #{nbert_forward.1} parent=67 // pred_check
          %p2163 = pneg %p346
        $region86: #{nbert_forward.1} parent=67 // pred_check_branch
          %2165 = sbr.rel (%p2163) target = $region88
        $region87: #{nbert_forward.1} parent=67 // pred_region
          %2166 = dma.done [#allocation5], 32
        $region88: #{nbert_forward.1} parent=67 // pred_fallthru
          _
      $region68: #{nbert_forward.1} parent=5 // pred_fallthru
        _
      %p2167 = scmp.le.s32.totalorder 2, %s19
      // Predicated region
      $region89: #{nbert_forward.1} parent=5 // pred_check
        %p2168 = pneg %p2167
      $region90: #{nbert_forward.1} parent=5 // pred_check_branch
        %2170 = sbr.rel (%p2168) target = $region92
      $region91: #{nbert_forward.1} parent=5 // pred_region
        %s2171 = ssub.s32 %s19, 2
      $region92: #{nbert_forward.1} parent=5 // pred_fallthru
        _
    $region6: #{nbert_forward.1} parent=1 // loop_footer
      %s23 = sadd.s32 1, %s19
    $region7: #{nbert_forward.1} parent=1 // loop_footer_branch
      %18 = sbr.rel target = $region3
    $region8: #{nbert_forward.1} parent=1 // loop_exit
      _
    %2172 = vsyncpa [#allocation5], 1
    %s2173 = scalar_lea.sflag [#allocation5], 1
    %2174 = vsyncpa %s2173, 1

</llo_original>
